<compile_context>
chip_gen: v7x
topology: tpu7x:2x2x1
jax: 0.10.0
libtpu: 0.0.40
codegen_flags: <defaults>
</compile_context>

<pallas_src>
import functools

import jax
import jax.numpy as jnp
from jax.experimental import pallas as pl
from jax.experimental.pallas import tpu as pltpu

LN_EPS = 1e-5       # nn.LayerNorm default
NORM_EPS = 1e-4     # eps used for support mean/std normalisation in the reference
F_NORM_EPS = 1e-12  # F.normalize default


def _layernorm(x, g, b):
    mu = jnp.mean(x, axis=-1, keepdims=True)
    var = jnp.mean((x - mu) ** 2, axis=-1, keepdims=True)
    return (x - mu) * jax.lax.rsqrt(var + LN_EPS) * g + b


# --------------------------------------------------------------------------------------
# Fused kernel: all transformer layers (grid axis d) + final LN + rule head + query logits
# --------------------------------------------------------------------------------------
def _mimic_fused_kernel(x_ref, xq_ref,
                        wqkv_ref, wo_ref, w1_ref, w2_ref, vecs_ref, b1_ref,
                        cvecs_ref, rw_ref,
                        proto_ref, logits_ref,
                        tok_ref,
                        *, heads, dim_head, batch_block, t_pad, t_valid, cls_pos):
    d = pl.program_id(1)
    inner = heads * dim_head
    Bb, T = batch_block, t_pad

    # Load the (padded) token block into the resident f32 scratch at the first layer step.
    @pl.when(d == 0)
    def _():
        tok_ref[...] = x_ref[...].reshape(Bb * T, -1).astype(jnp.float32)

    x = tok_ref[...]                                              # (Bb*T, C) f32

    vec = vecs_ref[0]                                             # (6, C) packed per-layer vectors
    ln1_g, ln1_b = vec[0:1, :], vec[1:2, :]
    bo = vec[2:3, :]
    ln2_g, ln2_b = vec[3:4, :], vec[4:5, :]
    b2 = vec[5:6, :]

    # ---- pre-LN multi-head self-attention (row-flattened matmuls feed the MXU) ----
    h = _layernorm(x, ln1_g, ln1_b)
    qkv = jnp.dot(h.astype(jnp.bfloat16), wqkv_ref[0],
                  preferred_element_type=jnp.float32)             # (Bb*T, 3*inner)
    # 1/sqrt(dim_head) is already folded into the q columns of wqkv (init-time transform).
    q = qkv[:, :inner].astype(jnp.bfloat16).reshape(Bb, T, inner)
    k = qkv[:, inner:2 * inner].astype(jnp.bfloat16).reshape(Bb, T, inner)
    v = qkv[:, 2 * inner:].astype(jnp.bfloat16).reshape(Bb, T, inner)

    key_ok = None
    if T > t_valid:  # mask padded key positions (pad tokens must not contaminate valid rows)
        key_ok = jax.lax.broadcasted_iota(jnp.int32, (1, 1, T), 2) < t_valid

    ctx_heads = []
    for hh in range(heads):                         # heads is a small static int
        cols = slice(hh * dim_head, (hh + 1) * dim_head)
        qh, kh, vh = q[:, :, cols], k[:, :, cols], v[:, :, cols]
        s = jnp.einsum('bqd,bkd->bqk', qh, kh,
                       preferred_element_type=jnp.float32)        # (Bb, T, T) batched over items
        if key_ok is not None:
            s = jnp.where(key_ok, s, -1e30)
        s = s - jnp.max(s, axis=-1, keepdims=True)
        p = jnp.exp(s)
        p = p * pl.reciprocal(jnp.sum(p, axis=-1, keepdims=True), approx=True)
        ctx_heads.append(jnp.einsum('bqk,bkd->bqd', p.astype(jnp.bfloat16), vh,
                                    preferred_element_type=jnp.float32))   # (Bb, T, dh)
    ctx = ctx_heads[0] if heads == 1 else jnp.concatenate(ctx_heads, axis=-1)  # (Bb, T, inner)
    ctx = ctx.reshape(Bb * T, inner).astype(jnp.bfloat16)
    # single fused output projection: (Bb*T, inner) x (inner, C)
    attn = jnp.dot(ctx, wo_ref[0], preferred_element_type=jnp.float32)
    x = x + attn + bo

    # ---- pre-LN MLP ----
    h2 = _layernorm(x, ln2_g, ln2_b)
    f = jnp.dot(h2.astype(jnp.bfloat16), w1_ref[0],
                preferred_element_type=jnp.float32) + b1_ref[0]
    f = jax.nn.gelu(f, approximate=True)            # tanh GELU -> EUP slot (small drift vs erf)
    f = jnp.dot(f.astype(jnp.bfloat16), w2_ref[0],
                preferred_element_type=jnp.float32) + b2
    x = x + f
    tok_ref[...] = x

    # ---- last layer step: transformer final LN + rule head + prototype query logits ----
    @pl.when(d == pl.num_programs(1) - 1)
    def _():
        cvec = cvecs_ref[...]                       # (8, C) packed constants
        fng, fnb = cvec[0:1, :], cvec[1:2, :]       # transformer final LayerNorm
        rg, rb = cvec[2:3, :], cvec[3:4, :]         # rule_head LayerNorm
        rbias = cvec[4:5, :]                        # rule_head Linear bias

        # gather the two cls tokens of every item into one (2*Bb, C) matrix -> single matmul
        pieces = [x[i * T + cls_pos:i * T + cls_pos + 2, :] for i in range(Bb)]
        cls = pieces[0] if Bb == 1 else jnp.concatenate(pieces, axis=0)
        cls = _layernorm(cls, fng, fnb)
        hr = _layernorm(cls, rg, rb)
        proto = jnp.dot(hr, rw_ref[...], preferred_element_type=jnp.float32) + rbias  # (2*Bb, C)
        proto_ref[...] = proto.reshape(Bb, 2, -1).astype(proto_ref.dtype)

        pn = proto * jax.lax.rsqrt(
            jnp.maximum(jnp.sum(proto * proto, axis=-1, keepdims=True), F_NORM_EPS ** 2))
        pn3 = pn.reshape(Bb, 2, -1)
        w = (pn3[:, 0:1, :] - pn3[:, 1:2, :]).astype(jnp.bfloat16)       # (Bb, 1, C)
        qn = xq_ref[...]                                                 # (Bb, Nq, C) bf16, pre-normalised
        # logits = qn . pn_pos - qn . pn_neg = qn . (pn_pos - pn_neg)
        logits_ref[...] = jnp.einsum('bkc,bnc->bkn', w, qn,
                                     preferred_element_type=jnp.float32
                                     ).astype(logits_ref.dtype)          # (Bb, 1, Nq)


def mimic_transformer(tokens, qn_bf16, params, *, heads, dim_head, n_support):
    """Runs the fused transformer + rule-head kernel. Returns (pos_proto, neg_proto, logits)."""
    B, T0, C = tokens.shape
    Nq = qn_bf16.shape[1]
    tfm = params['tfm']
    depth = tfm['wqkv'].shape[0]
    inner = heads * dim_head
    mlp = tfm['w1'].shape[-1]

    # pad sequence length to a multiple of 16 (bf16 sublane tile); attention masks padded keys
    t_pad = -(-T0 // 16) * 16
    if t_pad != T0:
        tokens = jnp.pad(tokens, ((0, 0), (0, t_pad - T0), (0, 0)))

    # batch items per grid step: flatten Bb*T rows into the QKV / proj / MLP matmuls, but keep
    # >= 2 batch blocks so the "parallel" axis can be split across v7x's two TensorCores.
    max_bb = max(1, 512 // t_pad)
    if B >= 2:
        max_bb = min(max_bb, B // 2)
    Bb = 1
    for cand in range(1, B + 1):
        if B % cand == 0 and cand <= max_bb:
            Bb = cand

    d_map = lambda b, d: (d, 0, 0)
    c2_map = lambda b, d: (0, 0)

    # explicit scoped-VMEM budget: 2x (double-buffered) per-layer weights + resident blocks +
    # constants + token scratch, with headroom for in-kernel temporaries.
    per_layer_w = 2 * (C * 3 * inner + inner * C + C * mlp + mlp * C) + 4 * (6 * C + mlp)
    io_blocks = 4 * Bb * t_pad * C + 2 * Bb * Nq * C + 4 * (Bb * 2 * C + Bb * Nq)
    consts = 4 * (8 * C + C * C)
    scratch = 4 * Bb * t_pad * C
    est = int((2 * per_layer_w + 2 * io_blocks + consts + scratch) * 1.5) + (8 << 20)
    # cap at 64 MiB (v7x physical); for much larger configs split the MLP matmuls over an mlp-tile
    # grid axis instead of raising this further.
    vmem_limit = int(min(max(est, 32 << 20), 64 << 20))

    kernel = functools.partial(
        _mimic_fused_kernel, heads=heads, dim_head=dim_head,
        batch_block=Bb, t_pad=t_pad, t_valid=T0, cls_pos=n_support)

    proto, logits = pl.pallas_call(
        kernel,
        out_shape=(jax.ShapeDtypeStruct((B, 2, C), jnp.float32),
                   jax.ShapeDtypeStruct((B, 1, Nq), jnp.float32)),
        grid=(B // Bb, depth),
        in_specs=[
            pl.BlockSpec((Bb, t_pad, C), lambda b, d: (b, 0, 0)),     # tokens
            pl.BlockSpec((Bb, Nq, C), lambda b, d: (b, 0, 0)),        # pre-normalised queries (bf16)
            pl.BlockSpec((1, C, 3 * inner), d_map),                   # wqkv
            pl.BlockSpec((1, inner, C), d_map),                       # wo
            pl.BlockSpec((1, C, mlp), d_map),                         # w1
            pl.BlockSpec((1, mlp, C), d_map),                         # w2
            pl.BlockSpec((1, 6, C), d_map),                           # packed per-layer vectors
            pl.BlockSpec((1, 1, mlp), d_map),                         # b1
            pl.BlockSpec((8, C), c2_map),                             # packed constant vectors
            pl.BlockSpec((C, C), c2_map),                             # rule_head weight
        ],
        out_specs=(pl.BlockSpec((Bb, 2, C), lambda b, d: (b, 0, 0)),
                   pl.BlockSpec((Bb, 1, Nq), lambda b, d: (b, 0, 0))),
        scratch_shapes=[pltpu.VMEM((Bb * t_pad, C), jnp.float32)],
        compiler_params=pltpu.CompilerParams(
            dimension_semantics=("parallel", "arbitrary"),
            vmem_limit_bytes=vmem_limit),
    )(tokens, qn_bf16, tfm['wqkv'], tfm['wo'], tfm['w1'], tfm['w2'],
      tfm['vecs'], tfm['b1'], params['const_vecs'], params['rule_w'])

    return proto[:, 0, :], proto[:, 1, :], logits[:, 0, :]


# --------------------------------------------------------------------------------------
# Parameters (deterministic synthetic init; layer weights stacked along a depth axis,
# matmul weights stored in bf16; per-layer / constant bias+LN vectors packed for few DMAs;
# 1/sqrt(dim_head) folded into the q columns of wqkv at init time)
# --------------------------------------------------------------------------------------
def init_params(key, latent_dim, depth, heads, dim_head, mlp_dim):
    C = latent_dim
    inner = heads * dim_head
    ks = jax.random.split(key, 9)
    nrm = lambda k, shape, s=0.02: jax.random.normal(k, shape, jnp.float32) * s
    ones = lambda shape: jnp.ones(shape, jnp.float32)
    zeros = lambda shape: jnp.zeros(shape, jnp.float32)

    wqkv = nrm(ks[3], (depth, C, 3 * inner))
    wqkv = wqkv.at[:, :, :inner].multiply(dim_head ** -0.5)   # one-time fold of 1/sqrt(dh) into q

    # packed per-layer C-width vectors: [ln1_g, ln1_b, bo, ln2_g, ln2_b, b2]
    vecs = jnp.stack([jnp.ones((depth, C)), jnp.zeros((depth, C)), jnp.zeros((depth, C)),
                      jnp.ones((depth, C)), jnp.zeros((depth, C)), jnp.zeros((depth, C))],
                     axis=1).astype(jnp.float32)              # (depth, 6, C)

    # packed constant C-width vectors: [final_ln_g, final_ln_b, rule_ln_g, rule_ln_b, rule_bias, 0,0,0]
    const_vecs = jnp.concatenate([ones((1, C)), zeros((1, C)),
                                  ones((1, C)), zeros((1, C)),
                                  nrm(ks[8], (1, C)),
                                  zeros((3, C))], axis=0)     # (8, C)

    return {
        'cls_token_hyp': nrm(ks[0], (1, 1, C)),
        'pos_indicator': nrm(ks[1], (1, 1, C)),
        'neg_indicator': nrm(ks[2], (1, 1, C)),
        'tfm': {
            'wqkv': wqkv.astype(jnp.bfloat16),
            'wo': nrm(ks[4], (depth, inner, C)).astype(jnp.bfloat16),
            'w1': nrm(ks[5], (depth, C, mlp_dim)).astype(jnp.bfloat16),
            'w2': nrm(ks[6], (depth, mlp_dim, C)).astype(jnp.bfloat16),
            'vecs': vecs,
            'b1': zeros((depth, 1, mlp_dim)),
        },
        'const_vecs': const_vecs,
        # rule_head Linear(C -> C)   (PROTOTYPE: out_dim == C)
        'rule_w': nrm(ks[7], (C, C)),
    }


# --------------------------------------------------------------------------------------
# Full forward (PROTOTYPE mimic, eval mode: no support dropout / label noise, enc_loss = 0)
# --------------------------------------------------------------------------------------
def mimic_forward(params, x_support, x_query, y_support, y_query, *, n_pos, heads, dim_head):
    B, Ns, C = x_support.shape

    # torch.std_mean(..., dim=-2, keepdims=True): unbiased std (ddof=1)
    mean = jnp.mean(x_support, axis=-2, keepdims=True)
    std = jnp.std(x_support, axis=-2, ddof=1, keepdims=True)
    xs_n = (x_support - mean) / (std + NORM_EPS)
    xq_n = (x_query - mean) / (std + NORM_EPS)

    # ---- gt rule (PROTOTYPE): class prototypes over support + query ----
    y_all = jnp.concatenate([y_support, y_query], axis=1).astype(jnp.float32)
    x_all = jnp.concatenate([xs_n, xq_n], axis=1)
    pos_gt = jnp.einsum('bn,bnc->bc', y_all, x_all) / jnp.sum(y_all, axis=-1, keepdims=True)
    neg_gt = jnp.einsum('bn,bnc->bc', 1.0 - y_all, x_all) / jnp.sum(1.0 - y_all, axis=-1, keepdims=True)

    # ---- split support into pos/neg (equal count per row; stable order, like masked reshape) ----
    order = jnp.argsort(jnp.where(y_support == 1, 0, 1), axis=1)   # stable: positives first, in order
    pos_idx, neg_idx = order[:, :n_pos], order[:, n_pos:]
    pos_sup = jnp.take_along_axis(xs_n, pos_idx[..., None], axis=1)
    neg_sup = jnp.take_along_axis(xs_n, neg_idx[..., None], axis=1)

    pos_emb = pos_sup + params['pos_indicator']
    neg_emb = neg_sup + params['neg_indicator']
    pos_cls = params['cls_token_hyp'] + params['pos_indicator']
    neg_cls = params['cls_token_hyp'] + params['neg_indicator']
    tokens = jnp.concatenate([pos_emb, neg_emb,
                              jnp.broadcast_to(pos_cls, (B, 1, C)),
                              jnp.broadcast_to(neg_cls, (B, 1, C))], axis=1)   # (B, Ns+2, C)

    # queries pre-L2-normalised (F.normalize) and cast to bf16 for the in-kernel logits dot
    qn = xq_n / jnp.maximum(jnp.linalg.norm(xq_n, axis=-1, keepdims=True), F_NORM_EPS)
    qn_bf16 = qn.astype(jnp.bfloat16)

    # ---- fused transformer + rule head + query logits (single Pallas kernel) ----
    pos_proto, neg_proto, logits = mimic_transformer(
        tokens, qn_bf16, params, heads=heads, dim_head=dim_head, n_support=Ns)

    def cos_loss(a, b):
        an = a / jnp.maximum(jnp.linalg.norm(a, axis=-1, keepdims=True), F_NORM_EPS)
        bn = b / jnp.maximum(jnp.linalg.norm(b, axis=-1, keepdims=True), F_NORM_EPS)
        return jnp.mean(1.0 - jnp.sum(an * bn, axis=-1))

    mimic_loss = cos_loss(pos_proto, pos_gt) + cos_loss(neg_proto, neg_gt)
    enc_loss = jnp.float32(0.0)   # train_encoder=False
    acc = ((logits >= 0) == (y_query == 1)).astype(jnp.float32)
    return acc, logits, enc_loss, mimic_loss


if __name__ == "__main__":
    # Small shapes consistent with the module (scaled-down latent/transformer config).
    B, Ns, Nq = 2, 8, 8
    C, depth, heads, dim_head, mlp_dim = 128, 2, 2, 64, 128
    n_pos = 4  # same number of positives per batch row (required by the masked reshape)

    key = jax.random.PRNGKey(0)
    kp, kx1, kx2, ky1, ky2 = jax.random.split(key, 5)
    params = init_params(kp, C, depth, heads, dim_head, mlp_dim)

    x_support = jax.random.normal(kx1, (B, Ns, C), jnp.float32)
    x_query = jax.random.normal(kx2, (B, Nq, C), jnp.float32)
    base = jnp.concatenate([jnp.ones((n_pos,), jnp.int32), jnp.zeros((Ns - n_pos,), jnp.int32)])
    y_support = jnp.stack([jax.random.permutation(k, base) for k in jax.random.split(ky1, B)])
    y_query = jax.random.bernoulli(ky2, 0.5, (B, Nq)).astype(jnp.int32)

    acc, logits, enc_loss, mimic_loss = mimic_forward(
        params, x_support, x_query, y_support, y_query,
        n_pos=n_pos, heads=heads, dim_head=dim_head)
    jax.block_until_ready((acc, logits, enc_loss, mimic_loss))

    assert acc.shape == (B, Nq) and logits.shape == (B, Nq)
    assert bool(jnp.isfinite(logits).all()) and bool(jnp.isfinite(mimic_loss))
    print("KERNEL_OK")
</pallas_src>

<mosaic_0001>
module attributes {stable_mosaic.version = 11 : i64} {
  func.func @_mimic_fused_kernel(%arg0: i32, %arg1: i32, %arg2: memref<1x16x128xf32, #tpu.memory_space<vmem>>, %arg3: memref<1x8x128xbf16, #tpu.memory_space<vmem>>, %arg4: memref<1x128x384xbf16, #tpu.memory_space<vmem>>, %arg5: memref<1x128x128xbf16, #tpu.memory_space<vmem>>, %arg6: memref<1x128x128xbf16, #tpu.memory_space<vmem>>, %arg7: memref<1x128x128xbf16, #tpu.memory_space<vmem>>, %arg8: memref<1x6x128xf32, #tpu.memory_space<vmem>>, %arg9: memref<1x1x128xf32, #tpu.memory_space<vmem>>, %arg10: memref<8x128xf32, #tpu.memory_space<vmem>>, %arg11: memref<128x128xf32, #tpu.memory_space<vmem>>, %arg12: memref<1x2x128xf32, #tpu.memory_space<vmem>>, %arg13: memref<1x1x8xf32, #tpu.memory_space<vmem>>, %arg14: memref<16x128xf32, #tpu.memory_space<vmem>>) attributes {dimension_semantics = [#tpu.dimension_semantics<parallel>, #tpu.dimension_semantics<arbitrary>], iteration_bounds = array<i64: 2, 2>, scalar_prefetch = 0 : i64, scratch_operands = 1 : i64, tpu.core_type = #tpu.core_type<tc>, window_params = [{transform_indices = @transform_0, window_bounds = array<i64: 1, 16, 128>}, {transform_indices = @transform_1, window_bounds = array<i64: 1, 8, 128>}, {transform_indices = @transform_2, window_bounds = array<i64: 1, 128, 384>}, {transform_indices = @transform_3, window_bounds = array<i64: 1, 128, 128>}, {transform_indices = @transform_4, window_bounds = array<i64: 1, 128, 128>}, {transform_indices = @transform_5, window_bounds = array<i64: 1, 128, 128>}, {transform_indices = @transform_6, window_bounds = array<i64: 1, 6, 128>}, {transform_indices = @transform_7, window_bounds = array<i64: 1, 1, 128>}, {pipeline_mode = #tpu.pipeline_mode<synchronous>, transform_indices = @transform_8, window_bounds = array<i64: 8, 128>}, {pipeline_mode = #tpu.pipeline_mode<synchronous>, transform_indices = @transform_9, window_bounds = array<i64: 128, 128>}, {transform_indices = @transform_10, window_bounds = array<i64: 1, 2, 128>}, {transform_indices = @transform_11, window_bounds = array<i64: 1, 1, 8>}]} {
    %c0_i32 = arith.constant 0 : i32
    %0 = arith.cmpi eq, %arg1, %c0_i32 : i32
    %1 = arith.extui %0 : i1 to i32
    %c0_i32_0 = arith.constant 0 : i32
    %2 = arith.cmpi ne, %1, %c0_i32_0 : i32
    scf.if %2 {
      %c0_50 = arith.constant 0 : index
      %c0_51 = arith.constant 0 : index
      %c0_52 = arith.constant 0 : index
      %153 = vector.load %arg2[%c0_50, %c0_51, %c0_52] : memref<1x16x128xf32, #tpu.memory_space<vmem>>, vector<1x16x128xf32>
      %154 = vector.shape_cast %153 : vector<1x16x128xf32> to vector<16x128xf32>
      %c0_53 = arith.constant 0 : index
      %c0_54 = arith.constant 0 : index
      %155 = vector.load %arg14[%c0_53, %c0_54] : memref<16x128xf32, #tpu.memory_space<vmem>>, vector<16x128xf32>
      tpu.vector_store %arg14[%c0_53, %c0_54], %154 {strides = array<i32>} : memref<16x128xf32, #tpu.memory_space<vmem>>, vector<16x128xf32>,
    } else {
    }
    %c0 = arith.constant 0 : index
    %c0_1 = arith.constant 0 : index
    %3 = vector.load %arg14[%c0, %c0_1] : memref<16x128xf32, #tpu.memory_space<vmem>>, vector<16x128xf32>
    %c0_2 = arith.constant 0 : index
    %c0_3 = arith.constant 0 : index
    %c0_4 = arith.constant 0 : index
    %4 = vector.load %arg8[%c0_2, %c0_3, %c0_4] : memref<1x6x128xf32, #tpu.memory_space<vmem>>, vector<1x6x128xf32>
    %5 = vector.shape_cast %4 : vector<1x6x128xf32> to vector<6x128xf32>
    %6 = vector.extract_strided_slice %5 {offsets = [0, 0], sizes = [1, 128], strides = [1, 1]} : vector<6x128xf32> to vector<1x128xf32>
    %7 = vector.extract_strided_slice %5 {offsets = [1, 0], sizes = [1, 128], strides = [1, 1]} : vector<6x128xf32> to vector<1x128xf32>
    %8 = vector.extract_strided_slice %5 {offsets = [2, 0], sizes = [1, 128], strides = [1, 1]} : vector<6x128xf32> to vector<1x128xf32>
    %9 = vector.extract_strided_slice %5 {offsets = [3, 0], sizes = [1, 128], strides = [1, 1]} : vector<6x128xf32> to vector<1x128xf32>
    %10 = vector.extract_strided_slice %5 {offsets = [4, 0], sizes = [1, 128], strides = [1, 1]} : vector<6x128xf32> to vector<1x128xf32>
    %11 = vector.extract_strided_slice %5 {offsets = [5, 0], sizes = [1, 128], strides = [1, 1]} : vector<6x128xf32> to vector<1x128xf32>
    %cst = arith.constant dense<0.000000e+00> : vector<16xf32>
    %12 = vector.multi_reduction <add>, %3, %cst [1] : vector<16x128xf32> to vector<16xf32>
    %13 = vector.shape_cast %12 : vector<16xf32> to vector<16x1xf32>
    %cst_5 = arith.constant 1.280000e+02 : f32
    %14 = vector.broadcast %cst_5 : f32 to vector<16x1xf32>
    %15 = arith.divf %13, %14 : vector<16x1xf32>
    %16 = vector.broadcast %15 : vector<16x1xf32> to vector<16x128xf32>
    %17 = arith.subf %3, %16 : vector<16x128xf32>
    %18 = arith.mulf %17, %17 : vector<16x128xf32>
    %cst_6 = arith.constant dense<0.000000e+00> : vector<16xf32>
    %19 = vector.multi_reduction <add>, %18, %cst_6 [1] : vector<16x128xf32> to vector<16xf32>
    %20 = vector.shape_cast %19 : vector<16xf32> to vector<16x1xf32>
    %cst_7 = arith.constant 1.280000e+02 : f32
    %21 = vector.broadcast %cst_7 : f32 to vector<16x1xf32>
    %22 = arith.divf %20, %21 : vector<16x1xf32>
    %23 = vector.broadcast %15 : vector<16x1xf32> to vector<16x128xf32>
    %24 = arith.subf %3, %23 : vector<16x128xf32>
    %cst_8 = arith.constant 9.99999974E-6 : f32
    %25 = vector.broadcast %cst_8 : f32 to vector<16x1xf32>
    %26 = arith.addf %22, %25 : vector<16x1xf32>
    %27 = math.rsqrt %26 : vector<16x1xf32>
    %28 = vector.broadcast %27 : vector<16x1xf32> to vector<16x128xf32>
    %29 = arith.mulf %24, %28 : vector<16x128xf32>
    %30 = vector.broadcast %6 : vector<1x128xf32> to vector<16x128xf32>
    %31 = arith.mulf %29, %30 : vector<16x128xf32>
    %32 = vector.broadcast %7 : vector<1x128xf32> to vector<16x128xf32>
    %33 = arith.addf %31, %32 : vector<16x128xf32>
    %34 = arith.truncf %33 : vector<16x128xf32> to vector<16x128xbf16>
    %c0_9 = arith.constant 0 : index
    %c0_10 = arith.constant 0 : index
    %c0_11 = arith.constant 0 : index
    %35 = vector.load %arg4[%c0_9, %c0_10, %c0_11] : memref<1x128x384xbf16, #tpu.memory_space<vmem>>, vector<1x128x384xbf16>
    %36 = vector.shape_cast %35 : vector<1x128x384xbf16> to vector<128x384xbf16>
    %cst_12 = arith.constant dense<0.000000e+00> : vector<16x384xf32>
    %37 = tpu.matmul %34, %36, %cst_12 {dimension_numbers = #tpu.dot_dimension_numbers<[1], [0], [0], [1], [0, 0, 1, 1], [], []>} : vector<16x128xbf16>, vector<128x384xbf16>, vector<16x384xf32> -> vector<16x384xf32>
    %38 = vector.extract_strided_slice %37 {offsets = [0, 0], sizes = [16, 128], strides = [1, 1]} : vector<16x384xf32> to vector<16x128xf32>
    %39 = arith.truncf %38 : vector<16x128xf32> to vector<16x128xbf16>
    %40 = vector.shape_cast %39 : vector<16x128xbf16> to vector<1x16x128xbf16>
    %41 = vector.extract_strided_slice %37 {offsets = [0, 128], sizes = [16, 128], strides = [1, 1]} : vector<16x384xf32> to vector<16x128xf32>
    %42 = arith.truncf %41 : vector<16x128xf32> to vector<16x128xbf16>
    %43 = vector.shape_cast %42 : vector<16x128xbf16> to vector<1x16x128xbf16>
    %44 = vector.extract_strided_slice %37 {offsets = [0, 256], sizes = [16, 128], strides = [1, 1]} : vector<16x384xf32> to vector<16x128xf32>
    %45 = arith.truncf %44 : vector<16x128xf32> to vector<16x128xbf16>
    %46 = vector.shape_cast %45 : vector<16x128xbf16> to vector<1x16x128xbf16>
    %47 = tpu.iota {dimensions = array<i32: 2>} : vector<1x1x16xi32>
    %c10_i32 = arith.constant 10 : i32
    %48 = vector.broadcast %c10_i32 : i32 to vector<1x1x16xi32>
    %49 = arith.cmpi slt, %47, %48 : vector<1x1x16xi32>
    %50 = vector.extract_strided_slice %40 {offsets = [0, 0, 0], sizes = [1, 16, 64], strides = [1, 1, 1]} : vector<1x16x128xbf16> to vector<1x16x64xbf16>
    %51 = vector.extract_strided_slice %43 {offsets = [0, 0, 0], sizes = [1, 16, 64], strides = [1, 1, 1]} : vector<1x16x128xbf16> to vector<1x16x64xbf16>
    %52 = vector.extract_strided_slice %46 {offsets = [0, 0, 0], sizes = [1, 16, 64], strides = [1, 1, 1]} : vector<1x16x128xbf16> to vector<1x16x64xbf16>
    "tpu.trace_start"() <{level = 10 : i32, message = "bqd,bkd->bqk"}> : () -> ()
    %cst_13 = arith.constant dense<0.000000e+00> : vector<1x16x16xf32>
    %53 = tpu.matmul %50, %51, %cst_13 {dimension_numbers = #tpu.dot_dimension_numbers<[2], [2], [1], [1], [0, 0, 0, 1, 1, 1], [0], [0]>} : vector<1x16x64xbf16>, vector<1x16x64xbf16>, vector<1x16x16xf32> -> vector<1x16x16xf32>
    %cst_14 = arith.constant -1.000000e+30 : f32
    "tpu.trace_stop"() : () -> ()
    %54 = vector.shape_cast %49 : vector<1x1x16xi1> to vector<1x1x16xi1>
    %55 = vector.broadcast %54 : vector<1x1x16xi1> to vector<1x16x16xi1>
    %56 = vector.broadcast %cst_14 : f32 to vector<1x16x16xf32>
    %57 = arith.select %55, %53, %56 : vector<1x16x16xi1>, vector<1x16x16xf32>
    %cst_15 = arith.constant dense<0xFF800000> : vector<1x16xf32>
    %58 = vector.multi_reduction <maximumf>, %57, %cst_15 [2] : vector<1x16x16xf32> to vector<1x16xf32>
    %59 = vector.shape_cast %58 : vector<1x16xf32> to vector<1x16x1xf32>
    %60 = vector.broadcast %59 : vector<1x16x1xf32> to vector<1x16x16xf32>
    %61 = arith.subf %57, %60 : vector<1x16x16xf32>
    %62 = math.exp %61 : vector<1x16x16xf32>
    %cst_16 = arith.constant dense<0.000000e+00> : vector<1x16xf32>
    %63 = vector.multi_reduction <add>, %62, %cst_16 [2] : vector<1x16x16xf32> to vector<1x16xf32>
    %64 = vector.shape_cast %63 : vector<1x16xf32> to vector<1x16x1xf32>
    %65 = tpu.reciprocal %64 {approx = true} : vector<1x16x1xf32> -> vector<1x16x1xf32>
    %66 = vector.broadcast %65 : vector<1x16x1xf32> to vector<1x16x16xf32>
    %67 = arith.mulf %62, %66 : vector<1x16x16xf32>
    %68 = arith.truncf %67 : vector<1x16x16xf32> to vector<1x16x16xbf16>
    "tpu.trace_start"() <{level = 10 : i32, message = "bqk,bkd->bqd"}> : () -> ()
    %cst_17 = arith.constant dense<0.000000e+00> : vector<1x16x64xf32>
    %69 = tpu.matmul %68, %52, %cst_17 {dimension_numbers = #tpu.dot_dimension_numbers<[2], [1], [1], [2], [0, 0, 0, 1, 1, 2], [0], [0]>} : vector<1x16x16xbf16>, vector<1x16x64xbf16>, vector<1x16x64xf32> -> vector<1x16x64xf32>
    "tpu.trace_stop"() : () -> ()
    %70 = vector.extract_strided_slice %40 {offsets = [0, 0, 64], sizes = [1, 16, 64], strides = [1, 1, 1]} : vector<1x16x128xbf16> to vector<1x16x64xbf16>
    %71 = vector.extract_strided_slice %43 {offsets = [0, 0, 64], sizes = [1, 16, 64], strides = [1, 1, 1]} : vector<1x16x128xbf16> to vector<1x16x64xbf16>
    %72 = vector.extract_strided_slice %46 {offsets = [0, 0, 64], sizes = [1, 16, 64], strides = [1, 1, 1]} : vector<1x16x128xbf16> to vector<1x16x64xbf16>
    "tpu.trace_start"() <{level = 10 : i32, message = "bqd,bkd->bqk"}> : () -> ()
    %cst_18 = arith.constant dense<0.000000e+00> : vector<1x16x16xf32>
    %73 = tpu.matmul %70, %71, %cst_18 {dimension_numbers = #tpu.dot_dimension_numbers<[2], [2], [1], [1], [0, 0, 0, 1, 1, 1], [0], [0]>} : vector<1x16x64xbf16>, vector<1x16x64xbf16>, vector<1x16x16xf32> -> vector<1x16x16xf32>
    %cst_19 = arith.constant -1.000000e+30 : f32
    "tpu.trace_stop"() : () -> ()
    %74 = vector.shape_cast %49 : vector<1x1x16xi1> to vector<1x1x16xi1>
    %75 = vector.broadcast %74 : vector<1x1x16xi1> to vector<1x16x16xi1>
    %76 = vector.broadcast %cst_19 : f32 to vector<1x16x16xf32>
    %77 = arith.select %75, %73, %76 : vector<1x16x16xi1>, vector<1x16x16xf32>
    %cst_20 = arith.constant dense<0xFF800000> : vector<1x16xf32>
    %78 = vector.multi_reduction <maximumf>, %77, %cst_20 [2] : vector<1x16x16xf32> to vector<1x16xf32>
    %79 = vector.shape_cast %78 : vector<1x16xf32> to vector<1x16x1xf32>
    %80 = vector.broadcast %79 : vector<1x16x1xf32> to vector<1x16x16xf32>
    %81 = arith.subf %77, %80 : vector<1x16x16xf32>
    %82 = math.exp %81 : vector<1x16x16xf32>
    %cst_21 = arith.constant dense<0.000000e+00> : vector<1x16xf32>
    %83 = vector.multi_reduction <add>, %82, %cst_21 [2] : vector<1x16x16xf32> to vector<1x16xf32>
    %84 = vector.shape_cast %83 : vector<1x16xf32> to vector<1x16x1xf32>
    %85 = tpu.reciprocal %84 {approx = true} : vector<1x16x1xf32> -> vector<1x16x1xf32>
    %86 = vector.broadcast %85 : vector<1x16x1xf32> to vector<1x16x16xf32>
    %87 = arith.mulf %82, %86 : vector<1x16x16xf32>
    %88 = arith.truncf %87 : vector<1x16x16xf32> to vector<1x16x16xbf16>
    "tpu.trace_start"() <{level = 10 : i32, message = "bqk,bkd->bqd"}> : () -> ()
    %cst_22 = arith.constant dense<0.000000e+00> : vector<1x16x64xf32>
    %89 = tpu.matmul %88, %72, %cst_22 {dimension_numbers = #tpu.dot_dimension_numbers<[2], [1], [1], [2], [0, 0, 0, 1, 1, 2], [0], [0]>} : vector<1x16x16xbf16>, vector<1x16x64xbf16>, vector<1x16x64xf32> -> vector<1x16x64xf32>
    "tpu.trace_stop"() : () -> ()
    %90 = tpu.concatenate %69, %89 in 2 : vector<1x16x64xf32>, vector<1x16x64xf32> -> vector<1x16x128xf32>
    %91 = vector.shape_cast %90 : vector<1x16x128xf32> to vector<16x128xf32>
    %92 = arith.truncf %91 : vector<16x128xf32> to vector<16x128xbf16>
    %c0_23 = arith.constant 0 : index
    %c0_24 = arith.constant 0 : index
    %c0_25 = arith.constant 0 : index
    %93 = vector.load %arg5[%c0_23, %c0_24, %c0_25] : memref<1x128x128xbf16, #tpu.memory_space<vmem>>, vector<1x128x128xbf16>
    %94 = vector.shape_cast %93 : vector<1x128x128xbf16> to vector<128x128xbf16>
    %cst_26 = arith.constant dense<0.000000e+00> : vector<16x128xf32>
    %95 = tpu.matmul %92, %94, %cst_26 {dimension_numbers = #tpu.dot_dimension_numbers<[1], [0], [0], [1], [0, 0, 1, 1], [], []>} : vector<16x128xbf16>, vector<128x128xbf16>, vector<16x128xf32> -> vector<16x128xf32>
    %96 = arith.addf %3, %95 : vector<16x128xf32>
    %97 = vector.broadcast %8 : vector<1x128xf32> to vector<16x128xf32>
    %98 = arith.addf %96, %97 : vector<16x128xf32>
    %cst_27 = arith.constant dense<0.000000e+00> : vector<16xf32>
    %99 = vector.multi_reduction <add>, %98, %cst_27 [1] : vector<16x128xf32> to vector<16xf32>
    %100 = vector.shape_cast %99 : vector<16xf32> to vector<16x1xf32>
    %cst_28 = arith.constant 1.280000e+02 : f32
    %101 = vector.broadcast %cst_28 : f32 to vector<16x1xf32>
    %102 = arith.divf %100, %101 : vector<16x1xf32>
    %103 = vector.broadcast %102 : vector<16x1xf32> to vector<16x128xf32>
    %104 = arith.subf %98, %103 : vector<16x128xf32>
    %105 = arith.mulf %104, %104 : vector<16x128xf32>
    %cst_29 = arith.constant dense<0.000000e+00> : vector<16xf32>
    %106 = vector.multi_reduction <add>, %105, %cst_29 [1] : vector<16x128xf32> to vector<16xf32>
    %107 = vector.shape_cast %106 : vector<16xf32> to vector<16x1xf32>
    %cst_30 = arith.constant 1.280000e+02 : f32
    %108 = vector.broadcast %cst_30 : f32 to vector<16x1xf32>
    %109 = arith.divf %107, %108 : vector<16x1xf32>
    %110 = vector.broadcast %102 : vector<16x1xf32> to vector<16x128xf32>
    %111 = arith.subf %98, %110 : vector<16x128xf32>
    %cst_31 = arith.constant 9.99999974E-6 : f32
    %112 = vector.broadcast %cst_31 : f32 to vector<16x1xf32>
    %113 = arith.addf %109, %112 : vector<16x1xf32>
    %114 = math.rsqrt %113 : vector<16x1xf32>
    %115 = vector.broadcast %114 : vector<16x1xf32> to vector<16x128xf32>
    %116 = arith.mulf %111, %115 : vector<16x128xf32>
    %117 = vector.broadcast %9 : vector<1x128xf32> to vector<16x128xf32>
    %118 = arith.mulf %116, %117 : vector<16x128xf32>
    %119 = vector.broadcast %10 : vector<1x128xf32> to vector<16x128xf32>
    %120 = arith.addf %118, %119 : vector<16x128xf32>
    %121 = arith.truncf %120 : vector<16x128xf32> to vector<16x128xbf16>
    %c0_32 = arith.constant 0 : index
    %c0_33 = arith.constant 0 : index
    %c0_34 = arith.constant 0 : index
    %122 = vector.load %arg6[%c0_32, %c0_33, %c0_34] : memref<1x128x128xbf16, #tpu.memory_space<vmem>>, vector<1x128x128xbf16>
    %123 = vector.shape_cast %122 : vector<1x128x128xbf16> to vector<128x128xbf16>
    %cst_35 = arith.constant dense<0.000000e+00> : vector<16x128xf32>
    %124 = tpu.matmul %121, %123, %cst_35 {dimension_numbers = #tpu.dot_dimension_numbers<[1], [0], [0], [1], [0, 0, 1, 1], [], []>} : vector<16x128xbf16>, vector<128x128xbf16>, vector<16x128xf32> -> vector<16x128xf32>
    %c0_36 = arith.constant 0 : index
    %c0_37 = arith.constant 0 : index
    %c0_38 = arith.constant 0 : index
    %125 = vector.load %arg9[%c0_36, %c0_37, %c0_38] : memref<1x1x128xf32, #tpu.memory_space<vmem>>, vector<1x1x128xf32>
    %126 = vector.shape_cast %125 : vector<1x1x128xf32> to vector<1x128xf32>
    %127 = vector.broadcast %126 : vector<1x128xf32> to vector<16x128xf32>
    %128 = arith.addf %124, %127 : vector<16x128xf32>
    %129 = arith.mulf %128, %128 : vector<16x128xf32>
    %130 = arith.mulf %128, %129 : vector<16x128xf32>
    %cst_39 = arith.constant 4.471500e-02 : f32
    %131 = vector.broadcast %cst_39 : f32 to vector<16x128xf32>
    %132 = arith.mulf %131, %130 : vector<16x128xf32>
    %133 = arith.addf %128, %132 : vector<16x128xf32>
    %cst_40 = arith.constant 0.797884583 : f32
    %134 = vector.broadcast %cst_40 : f32 to vector<16x128xf32>
    %135 = arith.mulf %134, %133 : vector<16x128xf32>
    %136 = math.tanh %135 : vector<16x128xf32>
    %cst_41 = arith.constant 1.000000e+00 : f32
    %137 = vector.broadcast %cst_41 : f32 to vector<16x128xf32>
    %138 = arith.addf %137, %136 : vector<16x128xf32>
    %cst_42 = arith.constant 5.000000e-01 : f32
    %139 = vector.broadcast %cst_42 : f32 to vector<16x128xf32>
    %140 = arith.mulf %139, %138 : vector<16x128xf32>
    %141 = arith.mulf %128, %140 : vector<16x128xf32>
    %142 = arith.truncf %141 : vector<16x128xf32> to vector<16x128xbf16>
    %c0_43 = arith.constant 0 : index
    %c0_44 = arith.constant 0 : index
    %c0_45 = arith.constant 0 : index
    %143 = vector.load %arg7[%c0_43, %c0_44, %c0_45] : memref<1x128x128xbf16, #tpu.memory_space<vmem>>, vector<1x128x128xbf16>
    %144 = vector.shape_cast %143 : vector<1x128x128xbf16> to vector<128x128xbf16>
    %cst_46 = arith.constant dense<0.000000e+00> : vector<16x128xf32>
    %145 = tpu.matmul %142, %144, %cst_46 {dimension_numbers = #tpu.dot_dimension_numbers<[1], [0], [0], [1], [0, 0, 1, 1], [], []>} : vector<16x128xbf16>, vector<128x128xbf16>, vector<16x128xf32> -> vector<16x128xf32>
    %146 = vector.broadcast %11 : vector<1x128xf32> to vector<16x128xf32>
    %147 = arith.addf %145, %146 : vector<16x128xf32>
    %148 = arith.addf %98, %147 : vector<16x128xf32>
    %c0_47 = arith.constant 0 : index
    %c0_48 = arith.constant 0 : index
    %149 = vector.load %arg14[%c0_47, %c0_48] : memref<16x128xf32, #tpu.memory_space<vmem>>, vector<16x128xf32>
    tpu.vector_store %arg14[%c0_47, %c0_48], %148 {strides = array<i32>} : memref<16x128xf32, #tpu.memory_space<vmem>>, vector<16x128xf32>,
    %c1_i32 = arith.constant 1 : i32
    %150 = arith.cmpi eq, %arg1, %c1_i32 : i32
    %151 = arith.extui %150 : i1 to i32
    %c0_i32_49 = arith.constant 0 : i32
    %152 = arith.cmpi ne, %151, %c0_i32_49 : i32
    scf.if %152 {
      %c0_50 = arith.constant 0 : index
      %c0_51 = arith.constant 0 : index
      %153 = vector.load %arg10[%c0_50, %c0_51] : memref<8x128xf32, #tpu.memory_space<vmem>>, vector<8x128xf32>
      %154 = vector.extract_strided_slice %153 {offsets = [0, 0], sizes = [1, 128], strides = [1, 1]} : vector<8x128xf32> to vector<1x128xf32>
      %155 = vector.extract_strided_slice %153 {offsets = [1, 0], sizes = [1, 128], strides = [1, 1]} : vector<8x128xf32> to vector<1x128xf32>
      %156 = vector.extract_strided_slice %153 {offsets = [2, 0], sizes = [1, 128], strides = [1, 1]} : vector<8x128xf32> to vector<1x128xf32>
      %157 = vector.extract_strided_slice %153 {offsets = [3, 0], sizes = [1, 128], strides = [1, 1]} : vector<8x128xf32> to vector<1x128xf32>
      %158 = vector.extract_strided_slice %153 {offsets = [4, 0], sizes = [1, 128], strides = [1, 1]} : vector<8x128xf32> to vector<1x128xf32>
      %159 = vector.extract_strided_slice %148 {offsets = [8, 0], sizes = [2, 128], strides = [1, 1]} : vector<16x128xf32> to vector<2x128xf32>
      %cst_52 = arith.constant dense<0.000000e+00> : vector<2xf32>
      %160 = vector.multi_reduction <add>, %159, %cst_52 [1] : vector<2x128xf32> to vector<2xf32>
      %161 = vector.shape_cast %160 : vector<2xf32> to vector<2x1xf32>
      %cst_53 = arith.constant 1.280000e+02 : f32
      %162 = vector.broadcast %cst_53 : f32 to vector<2x1xf32>
      %163 = arith.divf %161, %162 : vector<2x1xf32>
      %164 = vector.broadcast %163 : vector<2x1xf32> to vector<2x128xf32>
      %165 = arith.subf %159, %164 : vector<2x128xf32>
      %166 = arith.mulf %165, %165 : vector<2x128xf32>
      %cst_54 = arith.constant dense<0.000000e+00> : vector<2xf32>
      %167 = vector.multi_reduction <add>, %166, %cst_54 [1] : vector<2x128xf32> to vector<2xf32>
      %168 = vector.shape_cast %167 : vector<2xf32> to vector<2x1xf32>
      %cst_55 = arith.constant 1.280000e+02 : f32
      %169 = vector.broadcast %cst_55 : f32 to vector<2x1xf32>
      %170 = arith.divf %168, %169 : vector<2x1xf32>
      %171 = vector.broadcast %163 : vector<2x1xf32> to vector<2x128xf32>
      %172 = arith.subf %159, %171 : vector<2x128xf32>
      %cst_56 = arith.constant 9.99999974E-6 : f32
      %173 = vector.broadcast %cst_56 : f32 to vector<2x1xf32>
      %174 = arith.addf %170, %173 : vector<2x1xf32>
      %175 = math.rsqrt %174 : vector<2x1xf32>
      %176 = vector.broadcast %175 : vector<2x1xf32> to vector<2x128xf32>
      %177 = arith.mulf %172, %176 : vector<2x128xf32>
      %178 = vector.broadcast %154 : vector<1x128xf32> to vector<2x128xf32>
      %179 = arith.mulf %177, %178 : vector<2x128xf32>
      %180 = vector.broadcast %155 : vector<1x128xf32> to vector<2x128xf32>
      %181 = arith.addf %179, %180 : vector<2x128xf32>
      %cst_57 = arith.constant dense<0.000000e+00> : vector<2xf32>
      %182 = vector.multi_reduction <add>, %181, %cst_57 [1] : vector<2x128xf32> to vector<2xf32>
      %183 = vector.shape_cast %182 : vector<2xf32> to vector<2x1xf32>
      %cst_58 = arith.constant 1.280000e+02 : f32
      %184 = vector.broadcast %cst_58 : f32 to vector<2x1xf32>
      %185 = arith.divf %183, %184 : vector<2x1xf32>
      %186 = vector.broadcast %185 : vector<2x1xf32> to vector<2x128xf32>
      %187 = arith.subf %181, %186 : vector<2x128xf32>
      %188 = arith.mulf %187, %187 : vector<2x128xf32>
      %cst_59 = arith.constant dense<0.000000e+00> : vector<2xf32>
      %189 = vector.multi_reduction <add>, %188, %cst_59 [1] : vector<2x128xf32> to vector<2xf32>
      %190 = vector.shape_cast %189 : vector<2xf32> to vector<2x1xf32>
      %cst_60 = arith.constant 1.280000e+02 : f32
      %191 = vector.broadcast %cst_60 : f32 to vector<2x1xf32>
      %192 = arith.divf %190, %191 : vector<2x1xf32>
      %193 = vector.broadcast %185 : vector<2x1xf32> to vector<2x128xf32>
      %194 = arith.subf %181, %193 : vector<2x128xf32>
      %cst_61 = arith.constant 9.99999974E-6 : f32
      %195 = vector.broadcast %cst_61 : f32 to vector<2x1xf32>
      %196 = arith.addf %192, %195 : vector<2x1xf32>
      %197 = math.rsqrt %196 : vector<2x1xf32>
      %198 = vector.broadcast %197 : vector<2x1xf32> to vector<2x128xf32>
      %199 = arith.mulf %194, %198 : vector<2x128xf32>
      %200 = vector.broadcast %156 : vector<1x128xf32> to vector<2x128xf32>
      %201 = arith.mulf %199, %200 : vector<2x128xf32>
      %202 = vector.broadcast %157 : vector<1x128xf32> to vector<2x128xf32>
      %203 = arith.addf %201, %202 : vector<2x128xf32>
      %c0_62 = arith.constant 0 : index
      %c0_63 = arith.constant 0 : index
      %204 = vector.load %arg11[%c0_62, %c0_63] : memref<128x128xf32, #tpu.memory_space<vmem>>, vector<128x128xf32>
      %cst_64 = arith.constant dense<0.000000e+00> : vector<2x128xf32>
      %205 = tpu.matmul %203, %204, %cst_64 {dimension_numbers = #tpu.dot_dimension_numbers<[1], [0], [0], [1], [0, 0, 1, 1], [], []>} : vector<2x128xf32>, vector<128x128xf32>, vector<2x128xf32> -> vector<2x128xf32>
      %206 = vector.broadcast %158 : vector<1x128xf32> to vector<2x128xf32>
      %207 = arith.addf %205, %206 : vector<2x128xf32>
      %208 = vector.shape_cast %207 : vector<2x128xf32> to vector<1x2x128xf32>
      %c0_65 = arith.constant 0 : index
      %c0_66 = arith.constant 0 : index
      %c0_67 = arith.constant 0 : index
      %209 = vector.load %arg12[%c0_65, %c0_66, %c0_67] : memref<1x2x128xf32, #tpu.memory_space<vmem>>, vector<1x2x128xf32>
      tpu.vector_store %arg12[%c0_65, %c0_66, %c0_67], %208 {strides = array<i32>} : memref<1x2x128xf32, #tpu.memory_space<vmem>>, vector<1x2x128xf32>,
      %210 = arith.mulf %207, %207 : vector<2x128xf32>
      %cst_68 = arith.constant dense<0.000000e+00> : vector<2xf32>
      %211 = vector.multi_reduction <add>, %210, %cst_68 [1] : vector<2x128xf32> to vector<2xf32>
      %212 = vector.shape_cast %211 : vector<2xf32> to vector<2x1xf32>
      %cst_69 = arith.constant 1.000000e-24 : f32
      %213 = vector.broadcast %cst_69 : f32 to vector<2x1xf32>
      %214 = arith.maximumf %212, %213 : vector<2x1xf32>
      %215 = math.rsqrt %214 : vector<2x1xf32>
      %216 = vector.broadcast %215 : vector<2x1xf32> to vector<2x128xf32>
      %217 = arith.mulf %207, %216 : vector<2x128xf32>
      %218 = vector.shape_cast %217 : vector<2x128xf32> to vector<1x2x128xf32>
      %219 = vector.extract_strided_slice %218 {offsets = [0, 0, 0], sizes = [1, 1, 128], strides = [1, 1, 1]} : vector<1x2x128xf32> to vector<1x1x128xf32>
      %220 = vector.extract_strided_slice %218 {offsets = [0, 1, 0], sizes = [1, 1, 128], strides = [1, 1, 1]} : vector<1x2x128xf32> to vector<1x1x128xf32>
      %221 = arith.subf %219, %220 : vector<1x1x128xf32>
      %222 = arith.truncf %221 : vector<1x1x128xf32> to vector<1x1x128xbf16>
      %c0_70 = arith.constant 0 : index
      %c0_71 = arith.constant 0 : index
      %c0_72 = arith.constant 0 : index
      %223 = vector.load %arg3[%c0_70, %c0_71, %c0_72] : memref<1x8x128xbf16, #tpu.memory_space<vmem>>, vector<1x8x128xbf16>
      "tpu.trace_start"() <{level = 10 : i32, message = "bkc,bnc->bkn"}> : () -> ()
      %cst_73 = arith.constant dense<0.000000e+00> : vector<1x1x8xf32>
      %224 = tpu.matmul %222, %223, %cst_73 {dimension_numbers = #tpu.dot_dimension_numbers<[2], [2], [1], [1], [0, 0, 0, 1, 1, 1], [0], [0]>} : vector<1x1x128xbf16>, vector<1x8x128xbf16>, vector<1x1x8xf32> -> vector<1x1x8xf32>
      "tpu.trace_stop"() : () -> ()
      %c0_74 = arith.constant 0 : index
      %c0_75 = arith.constant 0 : index
      %c0_76 = arith.constant 0 : index
      %225 = vector.load %arg13[%c0_74, %c0_75, %c0_76] : memref<1x1x8xf32, #tpu.memory_space<vmem>>, vector<1x1x8xf32>
      tpu.vector_store %arg13[%c0_74, %c0_75, %c0_76], %224 {strides = array<i32>} : memref<1x1x8xf32, #tpu.memory_space<vmem>>, vector<1x1x8xf32>,
    } else {
    }
    return
  }
  func.func @transform_0(%arg0: i32, %arg1: i32) -> (i32, i32, i32) {
    %c0_i32 = arith.constant 0 : i32
    %c0_i32_0 = arith.constant 0 : i32
    %c0_i32_1 = arith.constant 0 : i32
    return %arg0, %c0_i32, %c0_i32_0 : i32, i32, i32
  }
  func.func @transform_1(%arg0: i32, %arg1: i32) -> (i32, i32, i32) {
    %c0_i32 = arith.constant 0 : i32
    %c0_i32_0 = arith.constant 0 : i32
    %c0_i32_1 = arith.constant 0 : i32
    return %arg0, %c0_i32, %c0_i32_0 : i32, i32, i32
  }
  func.func @transform_2(%arg0: i32, %arg1: i32) -> (i32, i32, i32) {
    %c0_i32 = arith.constant 0 : i32
    %c0_i32_0 = arith.constant 0 : i32
    %c0_i32_1 = arith.constant 0 : i32
    return %arg1, %c0_i32, %c0_i32_0 : i32, i32, i32
  }
  func.func @transform_3(%arg0: i32, %arg1: i32) -> (i32, i32, i32) {
    %c0_i32 = arith.constant 0 : i32
    %c0_i32_0 = arith.constant 0 : i32
    %c0_i32_1 = arith.constant 0 : i32
    return %arg1, %c0_i32, %c0_i32_0 : i32, i32, i32
  }
  func.func @transform_4(%arg0: i32, %arg1: i32) -> (i32, i32, i32) {
    %c0_i32 = arith.constant 0 : i32
    %c0_i32_0 = arith.constant 0 : i32
    %c0_i32_1 = arith.constant 0 : i32
    return %arg1, %c0_i32, %c0_i32_0 : i32, i32, i32
  }
  func.func @transform_5(%arg0: i32, %arg1: i32) -> (i32, i32, i32) {
    %c0_i32 = arith.constant 0 : i32
    %c0_i32_0 = arith.constant 0 : i32
    %c0_i32_1 = arith.constant 0 : i32
    return %arg1, %c0_i32, %c0_i32_0 : i32, i32, i32
  }
  func.func @transform_6(%arg0: i32, %arg1: i32) -> (i32, i32, i32) {
    %c0_i32 = arith.constant 0 : i32
    %c0_i32_0 = arith.constant 0 : i32
    %c0_i32_1 = arith.constant 0 : i32
    return %arg1, %c0_i32, %c0_i32_0 : i32, i32, i32
  }
  func.func @transform_7(%arg0: i32, %arg1: i32) -> (i32, i32, i32) {
    %c0_i32 = arith.constant 0 : i32
    %c0_i32_0 = arith.constant 0 : i32
    %c0_i32_1 = arith.constant 0 : i32
    return %arg1, %c0_i32, %c0_i32_0 : i32, i32, i32
  }
  func.func @transform_8(%arg0: i32, %arg1: i32) -> (i32, i32) {
    %c0_i32 = arith.constant 0 : i32
    %c0_i32_0 = arith.constant 0 : i32
    %c0_i32_1 = arith.constant 0 : i32
    return %c0_i32, %c0_i32_0 : i32, i32
  }
  func.func @transform_9(%arg0: i32, %arg1: i32) -> (i32, i32) {
    %c0_i32 = arith.constant 0 : i32
    %c0_i32_0 = arith.constant 0 : i32
    %c0_i32_1 = arith.constant 0 : i32
    return %c0_i32, %c0_i32_0 : i32, i32
  }
  func.func @transform_10(%arg0: i32, %arg1: i32) -> (i32, i32, i32) {
    %c0_i32 = arith.constant 0 : i32
    %c0_i32_0 = arith.constant 0 : i32
    %c0_i32_1 = arith.constant 0 : i32
    return %arg0, %c0_i32, %c0_i32_0 : i32, i32, i32
  }
  func.func @transform_11(%arg0: i32, %arg1: i32) -> (i32, i32, i32) {
    %c0_i32 = arith.constant 0 : i32
    %c0_i32_0 = arith.constant 0 : i32
    %c0_i32_1 = arith.constant 0 : i32
    return %arg0, %c0_i32, %c0_i32_0 : i32, i32, i32
  }
}

</mosaic_0001>

<llo_original>
// kernel: tpu_custom_call.1
$region0: #{tpu_custom_call.1}
  #allocation0 [shape = 'u32[]', space=smem, size = 0x4, offset = 0x4, fixed_abs, tag = 'smem constant byte address 0x4 - core index']
  #allocation1 [shape = 'u32[144,128]{1,0:T(1,128)}', space=vmem, size = 0x12000, scoped, tag = 'internal scratch']
  #allocation2 [shape = 'f32[16,128]{1,0:T(8,128)}', space=vmem, size = 0x2000, scoped, tag = 'scratch operand']
  %s0 = inlined_call_operand.hbm [shape: f32[2,16,128], index: 0, kind: input, shape index: {}]
  %s1 = inlined_call_operand.vmem [shape: bf16[2,8,128], index: 1, kind: input, shape index: {}]
  %s2 = inlined_call_operand.hbm [shape: bf16[2,128,384], index: 2, kind: input, shape index: {}]
  %s3 = inlined_call_operand.hbm [shape: bf16[2,128,128], index: 3, kind: input, shape index: {}]
  %s4 = inlined_call_operand.hbm [shape: bf16[2,128,128], index: 4, kind: input, shape index: {}]
  %s5 = inlined_call_operand.hbm [shape: bf16[2,128,128], index: 5, kind: input, shape index: {}]
  %s6 = inlined_call_operand.vmem [shape: f32[2,6,128], index: 6, kind: input, shape index: {}]
  %s7 = inlined_call_operand.vmem [shape: f32[2,1,128], index: 7, kind: input, shape index: {}]
  %s8 = inlined_call_operand.vmem [shape: f32[8,128], index: 8, kind: input, shape index: {}]
  %s9 = inlined_call_operand.hbm [shape: f32[128,128], index: 9, kind: input, shape index: {}]
  %s10 = inlined_call_operand.hbm [shape: f32[2,2,128], index: 10, kind: output, shape index: {0}]
  %s11 = inlined_call_operand.hbm [shape: f32[2,1,8], index: 11, kind: output, shape index: {1}]
  %12 = xla_tuple %s10, %s11
  %s13 = sld [smem:[#allocation0]]
  $region113: #{tpu_custom_call.1} parent=0
    _
  %s15 = ssub.s32 1, %s13
  %s16 = scalar_select 0, %s15, %s13
  $region1: #{tpu_custom_call.1} parent=0
    #allocation3 [shape = 'u8[16384]{0}', space=vmem, size = 0x4000, scoped, tag = 'input window, operand 0']
    #allocation4 [shape = 's32[2]{0}', space=sflag, size = 0x8, scoped, tag = 'scoped memory for tpu_custom_call.1']
    #allocation5 [shape = 's32[2]{0}', space=sflag, size = 0x8, scoped, tag = 'scoped memory for tpu_custom_call.1']
    #allocation6 [shape = 'u8[196608]{0}', space=vmem, size = 0x30000, scoped, tag = 'input window, operand 2']
    #allocation7 [shape = 's32[2]{0}', space=sflag, size = 0x8, scoped, tag = 'scoped memory for tpu_custom_call.1']
    #allocation8 [shape = 'u8[65536]{0}', space=vmem, size = 0x10000, scoped, tag = 'input window, operand 3']
    #allocation9 [shape = 'u8[65536]{0}', space=vmem, size = 0x10000, scoped, tag = 'input window, operand 4']
    #allocation10 [shape = 's32[2]{0}', space=sflag, size = 0x8, scoped, tag = 'scoped memory for tpu_custom_call.1']
    #allocation11 [shape = 'u8[65536]{0}', space=vmem, size = 0x10000, scoped, tag = 'input window, operand 5']
    #allocation12 [shape = 'u8[65536]{0}', space=vmem, size = 0x10000, scoped, tag = 'input window, operand 9, single buffered']
    #allocation13 [shape = 's32[1]{0}', space=sflag, size = 0x4, scoped, tag = 'scoped memory for tpu_custom_call.1']
    #allocation14 [shape = 'u8[2048]{0}', space=vmem, size = 0x800, scoped, tag = 'output window, operand 0']
    #allocation15 [shape = 'u8[1024]{0}', space=vmem, size = 0x400, scoped, tag = 'output window, operand 1']
    #allocation16 [shape = 's32[2]{0}', space=sflag, size = 0x8, scoped, tag = 'scoped memory for tpu_custom_call.1']
    %17 = vsyncpa [#allocation4], 0
    %s18 = scalar_lea.sflag [#allocation4], 1
    %19 = vsyncpa %s18, 0
    %20 = vsyncpa [#allocation7], 0
    %s21 = scalar_lea.sflag [#allocation7], 1
    %22 = vsyncpa %s21, 0
    %23 = vsyncpa [#allocation10], 0
    %s24 = scalar_lea.sflag [#allocation10], 1
    %25 = vsyncpa %s24, 0
    %26 = vsyncpa [#allocation13], 0
    %27 = vsyncpa [#allocation5], 0
    %s28 = scalar_lea.sflag [#allocation5], 1
    %29 = vsyncpa %s28, 0
    %30 = vsyncpa [#allocation16], 0
    %s31 = scalar_lea.sflag [#allocation16], 1
    %32 = vsyncpa %s31, 0
    loop: start=0, step=1, limit=6
    $region2: #{tpu_custom_call.1} parent=1 // loop_pre_header
      _
    $region3: #{tpu_custom_call.1} parent=1 // loop_header
      %s34 = sphi 0, %s38
      %p35 = scmp.ge.s32.totalorder %s34, 6
      %s41 = sphi 0, %s53
      %s42 = sphi 0, %s49
      %s43 = sphi 0, %s41
      %s44 = sphi 0, %s42
      %s45 = sphi 0, %s43
      %s46 = sphi 0, %s44
      %s56 = sphi 0, %s58
      %s59 = sphi 0, %s56
      %s60 = sphi 0, %s59
      %s76 = sphi 0, %s60
      %s82 = sphi 0, %s84
      %s85 = sphi 0, %s82
      %s86 = sphi 0, %s85
      %s102 = sphi 0, %s86
      %s108 = sphi 0, %s110
      %s111 = sphi 0, %s108
      %s112 = sphi 0, %s111
      %s128 = sphi 0, %s112
      %s134 = sphi 0, %s136
      %s137 = sphi 0, %s134
      %s138 = sphi 0, %s137
      %s154 = sphi 0, %s138
      %s160 = sphi 0, %s162
      %s163 = sphi 0, %s160
      %s164 = sphi 0, %s163
      %s180 = sphi 0, %s164
      %s186 = sphi 0, %s188
      %s189 = sphi 0, %s186
      %s190 = sphi 0, %s189
      %s206 = sphi 0, %s190
      %s212 = sphi 0, %s214
      %s215 = sphi 0, %s212
      %s216 = sphi 0, %s215
      %s232 = sphi 0, %s216
      %s238 = sphi 0, %s240
      %s241 = sphi 0, %s238
      %s242 = sphi 0, %s241
      %s258 = sphi 0, %s242
      %s262 = sphi 0, %s262
      %s264 = sphi 0, %s262
      %s265 = sphi 0, %s264
      %s279 = sphi 0, %s265
      %s283 = sphi 0, %s283
      %s285 = sphi 0, %s283
      %s286 = sphi 0, %s285
      %s300 = sphi 0, %s286
      %s306 = sphi 0, %s308
      %s309 = sphi 0, %s306
      %s310 = sphi 0, %s309
      %s326 = sphi 0, %s310
      %s332 = sphi 0, %s334
      %s335 = sphi 0, %s332
      %s336 = sphi 0, %s335
      %s352 = sphi 0, %s336
    $region4: #{tpu_custom_call.1} parent=1 // loop_header_branch
      %37 = sbr.rel (%p35) target = $region8
    $region5: #{tpu_custom_call.1} parent=1 // loop_body
      %s39 = ssub.s32 %s34, 1
      %s40 = ssub.s32 %s34, 2
      %s47 = sadd.s32 1, %s42
      %p48 = scmp.ge.s32.totalorder %s47, 2
      %s49 = scalar_select %p48, 0, %s47
      %s50 = sadd.s32 1, %s41
      %s51 = scalar_select %p48, %s50, %s41
      %p52 = scmp.ge.s32.totalorder %s51, 2
      %s53 = scalar_select %p52, 0, %s51
      %s54 = ssub.s32 %s41, %s53
      %p55 = scmp.eq.s32.totalorder %s54, 0
      %s57 = sadd.s32 %s56, 1
      %s58 = scalar_select %p55, %s56, %s57
      %p61 = pneg %p55
      %p62 = scmp.eq.s32.totalorder %s34, 3
      %p63 = por %p61, %p62
      %p64 = scmp.ne.s32.totalorder %s56, %s59
      %p65 = scmp.eq.s32.totalorder %s34, 0
      %p66 = por %p64, %p65
      %p67 = scmp.ne.s32.totalorder %s56, %s59
      %p68 = scmp.eq.s32.totalorder %s39, 3
      %p69 = por %p67, %p68
      %p70 = scmp.ne.s32.totalorder %s59, %s60
      %p71 = scmp.eq.s32.totalorder %s39, 0
      %p72 = por %p70, %p71
      %p73 = scmp.ne.s32.totalorder %s59, %s60
      %p74 = scmp.eq.s32.totalorder %s40, 3
      %p75 = por %p73, %p74
      %p77 = scmp.ne.s32.totalorder %s60, %s76
      %p78 = scmp.eq.s32.totalorder %s40, 0
      %p79 = por %p77, %p78
      %s80 = ssub.s32 %s41, %s53
      %p81 = scmp.eq.s32.totalorder %s80, 0
      %s83 = sadd.s32 %s82, 1
      %s84 = scalar_select %p81, %s82, %s83
      %p87 = pneg %p81
      %p88 = scmp.eq.s32.totalorder %s34, 3
      %p89 = por %p87, %p88
      %p90 = scmp.ne.s32.totalorder %s82, %s85
      %p91 = scmp.eq.s32.totalorder %s34, 0
      %p92 = por %p90, %p91
      %p93 = scmp.ne.s32.totalorder %s82, %s85
      %p94 = scmp.eq.s32.totalorder %s39, 3
      %p95 = por %p93, %p94
      %p96 = scmp.ne.s32.totalorder %s85, %s86
      %p97 = scmp.eq.s32.totalorder %s39, 0
      %p98 = por %p96, %p97
      %p99 = scmp.ne.s32.totalorder %s85, %s86
      %p100 = scmp.eq.s32.totalorder %s40, 3
      %p101 = por %p99, %p100
      %p103 = scmp.ne.s32.totalorder %s86, %s102
      %p104 = scmp.eq.s32.totalorder %s40, 0
      %p105 = por %p103, %p104
      %s106 = ssub.s32 %s42, %s49
      %p107 = scmp.eq.s32.totalorder %s106, 0
      %s109 = sadd.s32 %s108, 1
      %s110 = scalar_select %p107, %s108, %s109
      %p113 = pneg %p107
      %p114 = scmp.eq.s32.totalorder %s34, 3
      %p115 = por %p113, %p114
      %p116 = scmp.ne.s32.totalorder %s108, %s111
      %p117 = scmp.eq.s32.totalorder %s34, 0
      %p118 = por %p116, %p117
      %p119 = scmp.ne.s32.totalorder %s108, %s111
      %p120 = scmp.eq.s32.totalorder %s39, 3
      %p121 = por %p119, %p120
      %p122 = scmp.ne.s32.totalorder %s111, %s112
      %p123 = scmp.eq.s32.totalorder %s39, 0
      %p124 = por %p122, %p123
      %p125 = scmp.ne.s32.totalorder %s111, %s112
      %p126 = scmp.eq.s32.totalorder %s40, 3
      %p127 = por %p125, %p126
      %p129 = scmp.ne.s32.totalorder %s112, %s128
      %p130 = scmp.eq.s32.totalorder %s40, 0
      %p131 = por %p129, %p130
      %s132 = ssub.s32 %s42, %s49
      %p133 = scmp.eq.s32.totalorder %s132, 0
      %s135 = sadd.s32 %s134, 1
      %s136 = scalar_select %p133, %s134, %s135
      %p139 = pneg %p133
      %p140 = scmp.eq.s32.totalorder %s34, 3
      %p141 = por %p139, %p140
      %p142 = scmp.ne.s32.totalorder %s134, %s137
      %p143 = scmp.eq.s32.totalorder %s34, 0
      %p144 = por %p142, %p143
      %p145 = scmp.ne.s32.totalorder %s134, %s137
      %p146 = scmp.eq.s32.totalorder %s39, 3
      %p147 = por %p145, %p146
      %p148 = scmp.ne.s32.totalorder %s137, %s138
      %p149 = scmp.eq.s32.totalorder %s39, 0
      %p150 = por %p148, %p149
      %p151 = scmp.ne.s32.totalorder %s137, %s138
      %p152 = scmp.eq.s32.totalorder %s40, 3
      %p153 = por %p151, %p152
      %p155 = scmp.ne.s32.totalorder %s138, %s154
      %p156 = scmp.eq.s32.totalorder %s40, 0
      %p157 = por %p155, %p156
      %s158 = ssub.s32 %s42, %s49
      %p159 = scmp.eq.s32.totalorder %s158, 0
      %s161 = sadd.s32 %s160, 1
      %s162 = scalar_select %p159, %s160, %s161
      %p165 = pneg %p159
      %p166 = scmp.eq.s32.totalorder %s34, 3
      %p167 = por %p165, %p166
      %p168 = scmp.ne.s32.totalorder %s160, %s163
      %p169 = scmp.eq.s32.totalorder %s34, 0
      %p170 = por %p168, %p169
      %p171 = scmp.ne.s32.totalorder %s160, %s163
      %p172 = scmp.eq.s32.totalorder %s39, 3
      %p173 = por %p171, %p172
      %p174 = scmp.ne.s32.totalorder %s163, %s164
      %p175 = scmp.eq.s32.totalorder %s39, 0
      %p176 = por %p174, %p175
      %p177 = scmp.ne.s32.totalorder %s163, %s164
      %p178 = scmp.eq.s32.totalorder %s40, 3
      %p179 = por %p177, %p178
      %p181 = scmp.ne.s32.totalorder %s164, %s180
      %p182 = scmp.eq.s32.totalorder %s40, 0
      %p183 = por %p181, %p182
      %s184 = ssub.s32 %s42, %s49
      %p185 = scmp.eq.s32.totalorder %s184, 0
      %s187 = sadd.s32 %s186, 1
      %s188 = scalar_select %p185, %s186, %s187
      %p191 = pneg %p185
      %p192 = scmp.eq.s32.totalorder %s34, 3
      %p193 = por %p191, %p192
      %p194 = scmp.ne.s32.totalorder %s186, %s189
      %p195 = scmp.eq.s32.totalorder %s34, 0
      %p196 = por %p194, %p195
      %p197 = scmp.ne.s32.totalorder %s186, %s189
      %p198 = scmp.eq.s32.totalorder %s39, 3
      %p199 = por %p197, %p198
      %p200 = scmp.ne.s32.totalorder %s189, %s190
      %p201 = scmp.eq.s32.totalorder %s39, 0
      %p202 = por %p200, %p201
      %p203 = scmp.ne.s32.totalorder %s189, %s190
      %p204 = scmp.eq.s32.totalorder %s40, 3
      %p205 = por %p203, %p204
      %p207 = scmp.ne.s32.totalorder %s190, %s206
      %p208 = scmp.eq.s32.totalorder %s40, 0
      %p209 = por %p207, %p208
      %s210 = ssub.s32 %s42, %s49
      %p211 = scmp.eq.s32.totalorder %s210, 0
      %s213 = sadd.s32 %s212, 1
      %s214 = scalar_select %p211, %s212, %s213
      %p217 = pneg %p211
      %p218 = scmp.eq.s32.totalorder %s34, 3
      %p219 = por %p217, %p218
      %p220 = scmp.ne.s32.totalorder %s212, %s215
      %p221 = scmp.eq.s32.totalorder %s34, 0
      %p222 = por %p220, %p221
      %p223 = scmp.ne.s32.totalorder %s212, %s215
      %p224 = scmp.eq.s32.totalorder %s39, 3
      %p225 = por %p223, %p224
      %p226 = scmp.ne.s32.totalorder %s215, %s216
      %p227 = scmp.eq.s32.totalorder %s39, 0
      %p228 = por %p226, %p227
      %p229 = scmp.ne.s32.totalorder %s215, %s216
      %p230 = scmp.eq.s32.totalorder %s40, 3
      %p231 = por %p229, %p230
      %p233 = scmp.ne.s32.totalorder %s216, %s232
      %p234 = scmp.eq.s32.totalorder %s40, 0
      %p235 = por %p233, %p234
      %s236 = ssub.s32 %s42, %s49
      %p237 = scmp.eq.s32.totalorder %s236, 0
      %s239 = sadd.s32 %s238, 1
      %s240 = scalar_select %p237, %s238, %s239
      %p243 = pneg %p237
      %p244 = scmp.eq.s32.totalorder %s34, 3
      %p245 = por %p243, %p244
      %p246 = scmp.ne.s32.totalorder %s238, %s241
      %p247 = scmp.eq.s32.totalorder %s34, 0
      %p248 = por %p246, %p247
      %p249 = scmp.ne.s32.totalorder %s238, %s241
      %p250 = scmp.eq.s32.totalorder %s39, 3
      %p251 = por %p249, %p250
      %p252 = scmp.ne.s32.totalorder %s241, %s242
      %p253 = scmp.eq.s32.totalorder %s39, 0
      %p254 = por %p252, %p253
      %p255 = scmp.ne.s32.totalorder %s241, %s242
      %p256 = scmp.eq.s32.totalorder %s40, 3
      %p257 = por %p255, %p256
      %p259 = scmp.ne.s32.totalorder %s242, %s258
      %p260 = scmp.eq.s32.totalorder %s40, 0
      %p261 = por %p259, %p260
      %s263 = sadd.s32 %s262, 1
      %p266 = scmp.eq.s32.totalorder %s34, 3
      %p267 = scmp.ne.s32.totalorder %s262, %s264
      %p268 = scmp.eq.s32.totalorder %s34, 0
      %p269 = por %p267, %p268
      %p270 = scmp.ne.s32.totalorder %s262, %s264
      %p271 = scmp.eq.s32.totalorder %s39, 3
      %p272 = por %p270, %p271
      %p273 = scmp.ne.s32.totalorder %s264, %s265
      %p274 = scmp.eq.s32.totalorder %s39, 0
      %p275 = por %p273, %p274
      %p276 = scmp.ne.s32.totalorder %s264, %s265
      %p277 = scmp.eq.s32.totalorder %s40, 3
      %p278 = por %p276, %p277
      %p280 = scmp.ne.s32.totalorder %s265, %s279
      %p281 = scmp.eq.s32.totalorder %s40, 0
      %p282 = por %p280, %p281
      %s284 = sadd.s32 %s283, 1
      %p287 = scmp.eq.s32.totalorder %s34, 3
      %p288 = scmp.ne.s32.totalorder %s283, %s285
      %p289 = scmp.eq.s32.totalorder %s34, 0
      %p290 = por %p288, %p289
      %p291 = scmp.ne.s32.totalorder %s283, %s285
      %p292 = scmp.eq.s32.totalorder %s39, 3
      %p293 = por %p291, %p292
      %p294 = scmp.ne.s32.totalorder %s285, %s286
      %p295 = scmp.eq.s32.totalorder %s39, 0
      %p296 = por %p294, %p295
      %p297 = scmp.ne.s32.totalorder %s285, %s286
      %p298 = scmp.eq.s32.totalorder %s40, 3
      %p299 = por %p297, %p298
      %p301 = scmp.ne.s32.totalorder %s286, %s300
      %p302 = scmp.eq.s32.totalorder %s40, 0
      %p303 = por %p301, %p302
      %s304 = ssub.s32 %s41, %s53
      %p305 = scmp.eq.s32.totalorder %s304, 0
      %s307 = sadd.s32 %s306, 1
      %s308 = scalar_select %p305, %s306, %s307
      %p311 = pneg %p305
      %p312 = scmp.eq.s32.totalorder %s34, 3
      %p313 = por %p311, %p312
      %p314 = scmp.ne.s32.totalorder %s306, %s309
      %p315 = scmp.eq.s32.totalorder %s34, 0
      %p316 = por %p314, %p315
      %p317 = scmp.ne.s32.totalorder %s306, %s309
      %p318 = scmp.eq.s32.totalorder %s39, 3
      %p319 = por %p317, %p318
      %p320 = scmp.ne.s32.totalorder %s309, %s310
      %p321 = scmp.eq.s32.totalorder %s39, 0
      %p322 = por %p320, %p321
      %p323 = scmp.ne.s32.totalorder %s309, %s310
      %p324 = scmp.eq.s32.totalorder %s40, 3
      %p325 = por %p323, %p324
      %p327 = scmp.ne.s32.totalorder %s310, %s326
      %p328 = scmp.eq.s32.totalorder %s40, 0
      %p329 = por %p327, %p328
      %s330 = ssub.s32 %s41, %s53
      %p331 = scmp.eq.s32.totalorder %s330, 0
      %s333 = sadd.s32 %s332, 1
      %s334 = scalar_select %p331, %s332, %s333
      %p337 = pneg %p331
      %p338 = scmp.eq.s32.totalorder %s34, 3
      %p339 = por %p337, %p338
      %p340 = scmp.ne.s32.totalorder %s332, %s335
      %p341 = scmp.eq.s32.totalorder %s34, 0
      %p342 = por %p340, %p341
      %p343 = scmp.ne.s32.totalorder %s332, %s335
      %p344 = scmp.eq.s32.totalorder %s39, 3
      %p345 = por %p343, %p344
      %p346 = scmp.ne.s32.totalorder %s335, %s336
      %p347 = scmp.eq.s32.totalorder %s39, 0
      %p348 = por %p346, %p347
      %p349 = scmp.ne.s32.totalorder %s335, %s336
      %p350 = scmp.eq.s32.totalorder %s40, 3
      %p351 = por %p349, %p350
      %p353 = scmp.ne.s32.totalorder %s336, %s352
      %p354 = scmp.eq.s32.totalorder %s40, 0
      %p355 = por %p353, %p354
      %p356 = scmp.le.s32.totalorder 1, %s34
      %p357 = scmp.lt.s32.totalorder %s34, 5
      %p358 = pnand %p356, %p357
      %p359 = pneg %p358
      // Predicated region
      $region9: #{tpu_custom_call.1} parent=5 // pred_check
        _
      $region10: #{tpu_custom_call.1} parent=5 // pred_check_branch
        %361 = sbr.rel (%p358) target = $region12
      $region11: #{tpu_custom_call.1} parent=5 // pred_region
        %s362 = ssub.s32 %s34, 1
        // Predicated region
        $region13: #{tpu_custom_call.1} parent=11 // pred_check
          %p363 = pneg %p275
        $region14: #{tpu_custom_call.1} parent=11 // pred_check_branch
          %365 = sbr.rel (%p363) target = $region16
        $region15: #{tpu_custom_call.1} parent=11 // pred_region
          _
        $region16: #{tpu_custom_call.1} parent=11 // pred_fallthru
          _
        // Predicated region
        $region17: #{tpu_custom_call.1} parent=11 // pred_check
          %p366 = pneg %p296
        $region18: #{tpu_custom_call.1} parent=11 // pred_check_branch
          %368 = sbr.rel (%p366) target = $region20
        $region19: #{tpu_custom_call.1} parent=11 // pred_region
          %s370 = ssub.s32 2048, 2048
          %371 = vsyncadd [#allocation13], %s370
          %s372 = sshll.u32 [#allocation12], 4
          %s373 = int_to_ptr.vmem [resolvable:$true] %s372
          %378 = dma.hbm_to_vmem [thread:$0]  %s9, 2048, %s373, [#allocation13], 128, 128, 8
        $region20: #{tpu_custom_call.1} parent=11 // pred_fallthru
          _
      $region12: #{tpu_custom_call.1} parent=5 // pred_fallthru
        _
      %p379 = scmp.lt.s32.totalorder %s34, 4
      // Predicated region
      $region21: #{tpu_custom_call.1} parent=5 // pred_check
        %p380 = pneg %p379
      $region22: #{tpu_custom_call.1} parent=5 // pred_check_branch
        %382 = sbr.rel (%p380) target = $region24
      $region23: #{tpu_custom_call.1} parent=5 // pred_region
        // Predicated region
        $region25: #{tpu_custom_call.1} parent=23 // pred_check
          %p383 = pneg %p66
        $region26: #{tpu_custom_call.1} parent=23 // pred_check_branch
          %385 = sbr.rel (%p383) target = $region28
        $region27: #{tpu_custom_call.1} parent=23 // pred_region
          %s386 = sand.u32 %s56, 1
          %s387 = scalar_lea.sflag [#allocation4], %s386
          %s388 = sand.u32 %s56, 1
          %s389 = smul.addr %s388, 16
          %s390 = scalar_lea.vmem [#allocation3], %s389
          %s392 = ssub.s32 256, 256
          %393 = vsyncadd %s387, %s392
          %s394 = smul.addr %s41, 2
          %s395 = smul.addr %s394, 128
          %s396 = scalar_lea.hbm %s0, %s395
          %s397 = sshll.u32 %s390, 4
          %s398 = int_to_ptr.vmem [resolvable:$true] %s397
          %403 = dma.hbm_to_vmem [thread:$0]  %s396, 256, %s398, %s387, 128, 128, 8
        $region28: #{tpu_custom_call.1} parent=23 // pred_fallthru
          _
        // Predicated region
        $region29: #{tpu_custom_call.1} parent=23 // pred_check
          %p404 = pneg %p92
        $region30: #{tpu_custom_call.1} parent=23 // pred_check_branch
          %406 = sbr.rel (%p404) target = $region32
        $region31: #{tpu_custom_call.1} parent=23 // pred_region
          %p407 = scmp.lt.s32.totalorder %s41, 1
          %s408 = scalar_select %p407, %s41, 1
          %s409 = smul.addr %s408, 4
          %s410 = scalar_lea.vmem %s1, %s409
        $region32: #{tpu_custom_call.1} parent=23 // pred_fallthru
          _
        // Predicated region
        $region33: #{tpu_custom_call.1} parent=23 // pred_check
          %p411 = pneg %p118
        $region34: #{tpu_custom_call.1} parent=23 // pred_check_branch
          %413 = sbr.rel (%p411) target = $region36
        $region35: #{tpu_custom_call.1} parent=23 // pred_region
          %s414 = sand.u32 %s34, 1
          %s415 = scalar_lea.sflag [#allocation7], %s414
          %s416 = sand.u32 %s108, 1
          %s417 = smul.addr %s416, 192
          %s418 = scalar_lea.vmem [#allocation6], %s417
          %s420 = ssub.s32 3072, 3072
          %421 = vsyncadd %s415, %s420
          %s422 = smul.addr %s42, 48
          %s423 = smul.addr %s422, 64
          %s424 = scalar_lea.hbm %s2, %s423
          %s425 = sshll.u32 %s418, 4
          %s426 = int_to_ptr.vmem [resolvable:$true] %s425
          %431 = dma.hbm_to_vmem [thread:$0]  %s424, 3072, %s426, %s415, 192, 192, 12
        $region36: #{tpu_custom_call.1} parent=23 // pred_fallthru
          _
        // Predicated region
        $region37: #{tpu_custom_call.1} parent=23 // pred_check
          %p432 = pneg %p144
        $region38: #{tpu_custom_call.1} parent=23 // pred_check_branch
          %434 = sbr.rel (%p432) target = $region40
        $region39: #{tpu_custom_call.1} parent=23 // pred_region
          %s435 = sand.u32 %s34, 1
          %s436 = scalar_lea.sflag [#allocation7], %s435
          %s437 = sand.u32 %s134, 1
          %s438 = smul.addr %s437, 64
          %s439 = scalar_lea.vmem [#allocation8], %s438
          %s441 = ssub.s32 1024, 1024
          %442 = vsyncadd %s436, %s441
          %s443 = smul.addr %s42, 16
          %s444 = smul.addr %s443, 64
          %s445 = scalar_lea.hbm %s3, %s444
          %s446 = sshll.u32 %s439, 4
          %s447 = int_to_ptr.vmem [resolvable:$true] %s446
          %452 = dma.hbm_to_vmem [thread:$0]  %s445, 1024, %s447, %s436, 64, 64, 4
        $region40: #{tpu_custom_call.1} parent=23 // pred_fallthru
          _
        // Predicated region
        $region41: #{tpu_custom_call.1} parent=23 // pred_check
          %p453 = pneg %p170
        $region42: #{tpu_custom_call.1} parent=23 // pred_check_branch
          %455 = sbr.rel (%p453) target = $region44
        $region43: #{tpu_custom_call.1} parent=23 // pred_region
          %s456 = sand.u32 %s34, 1
          %s457 = scalar_lea.sflag [#allocation10], %s456
          %s458 = sand.u32 %s160, 1
          %s459 = smul.addr %s458, 64
          %s460 = scalar_lea.vmem [#allocation9], %s459
          %s462 = ssub.s32 1024, 1024
          %463 = vsyncadd %s457, %s462
          %s464 = smul.addr %s42, 16
          %s465 = smul.addr %s464, 64
          %s466 = scalar_lea.hbm %s4, %s465
          %s467 = sshll.u32 %s460, 4
          %s468 = int_to_ptr.vmem [resolvable:$true] %s467
          %473 = dma.hbm_to_vmem [thread:$0]  %s466, 1024, %s468, %s457, 64, 64, 4
        $region44: #{tpu_custom_call.1} parent=23 // pred_fallthru
          _
        // Predicated region
        $region45: #{tpu_custom_call.1} parent=23 // pred_check
          %p474 = pneg %p196
        $region46: #{tpu_custom_call.1} parent=23 // pred_check_branch
          %476 = sbr.rel (%p474) target = $region48
        $region47: #{tpu_custom_call.1} parent=23 // pred_region
          %s477 = sand.u32 %s34, 1
          %s478 = scalar_lea.sflag [#allocation10], %s477
          %s479 = sand.u32 %s186, 1
          %s480 = smul.addr %s479, 64
          %s481 = scalar_lea.vmem [#allocation11], %s480
          %s483 = ssub.s32 1024, 1024
          %484 = vsyncadd %s478, %s483
          %s485 = smul.addr %s42, 16
          %s486 = smul.addr %s485, 64
          %s487 = scalar_lea.hbm %s5, %s486
          %s488 = sshll.u32 %s481, 4
          %s489 = int_to_ptr.vmem [resolvable:$true] %s488
          %494 = dma.hbm_to_vmem [thread:$0]  %s487, 1024, %s489, %s478, 64, 64, 4
        $region48: #{tpu_custom_call.1} parent=23 // pred_fallthru
          _
        // Predicated region
        $region49: #{tpu_custom_call.1} parent=23 // pred_check
          %p495 = pneg %p222
        $region50: #{tpu_custom_call.1} parent=23 // pred_check_branch
          %497 = sbr.rel (%p495) target = $region52
        $region51: #{tpu_custom_call.1} parent=23 // pred_region
          %p498 = scmp.lt.s32.totalorder %s42, 1
          %s499 = scalar_select %p498, %s42, 1
          %s500 = smul.addr %s499, 8
          %s501 = scalar_lea.vmem %s6, %s500
        $region52: #{tpu_custom_call.1} parent=23 // pred_fallthru
          _
        // Predicated region
        $region53: #{tpu_custom_call.1} parent=23 // pred_check
          %p502 = pneg %p248
        $region54: #{tpu_custom_call.1} parent=23 // pred_check_branch
          %504 = sbr.rel (%p502) target = $region56
        $region55: #{tpu_custom_call.1} parent=23 // pred_region
          %p505 = scmp.lt.s32.totalorder %s42, 1
          %s506 = scalar_select %p505, %s42, 1
          %s507 = scalar_lea.vmem %s7, %s506
        $region56: #{tpu_custom_call.1} parent=23 // pred_fallthru
          _
      $region24: #{tpu_custom_call.1} parent=5 // pred_fallthru
        _
      %p508 = scmp.le.s32.totalorder 1, %s34
      %p509 = scmp.lt.s32.totalorder %s34, 5
      %p510 = pnand %p508, %p509
      %p511 = pneg %p510
      // Predicated region
      $region57: #{tpu_custom_call.1} parent=5 // pred_check
        _
      $region58: #{tpu_custom_call.1} parent=5 // pred_check_branch
        %513 = sbr.rel (%p510) target = $region60
      $region59: #{tpu_custom_call.1} parent=5 // pred_region
        %s514 = ssub.s32 %s34, 1
        %s515 = sand.u32 %s59, 1
        %s516 = scalar_lea.sflag [#allocation4], %s515
        %s517 = sand.u32 %s59, 1
        %s518 = smul.addr %s517, 16
        %s519 = scalar_lea.vmem [#allocation3], %s518
        // Predicated region
        $region61: #{tpu_custom_call.1} parent=59 // pred_check
          %p520 = pneg %p72
        $region62: #{tpu_custom_call.1} parent=59 // pred_check_branch
          %522 = sbr.rel (%p520) target = $region64
        $region63: #{tpu_custom_call.1} parent=59 // pred_region
          %523 = dma.done %s516, 256
        $region64: #{tpu_custom_call.1} parent=59 // pred_fallthru
          _
        %s524 = sand.u32 %s39, 1
        %s525 = scalar_lea.sflag [#allocation7], %s524
        %s526 = sand.u32 %s111, 1
        %s527 = smul.addr %s526, 192
        %s528 = scalar_lea.vmem [#allocation6], %s527
        // Predicated region
        $region65: #{tpu_custom_call.1} parent=59 // pred_check
          %p529 = pneg %p124
        $region66: #{tpu_custom_call.1} parent=59 // pred_check_branch
          %531 = sbr.rel (%p529) target = $region68
        $region67: #{tpu_custom_call.1} parent=59 // pred_region
          %532 = dma.done %s525, 3072
        $region68: #{tpu_custom_call.1} parent=59 // pred_fallthru
          _
        %s533 = sand.u32 %s39, 1
        %s534 = scalar_lea.sflag [#allocation7], %s533
        %s535 = sand.u32 %s137, 1
        %s536 = smul.addr %s535, 64
        %s537 = scalar_lea.vmem [#allocation8], %s536
        // Predicated region
        $region69: #{tpu_custom_call.1} parent=59 // pred_check
          %p538 = pneg %p150
        $region70: #{tpu_custom_call.1} parent=59 // pred_check_branch
          %540 = sbr.rel (%p538) target = $region72
        $region71: #{tpu_custom_call.1} parent=59 // pred_region
          %541 = dma.done %s534, 1024
        $region72: #{tpu_custom_call.1} parent=59 // pred_fallthru
          _
        %s542 = sand.u32 %s39, 1
        %s543 = scalar_lea.sflag [#allocation10], %s542
        %s544 = sand.u32 %s163, 1
        %s545 = smul.addr %s544, 64
        %s546 = scalar_lea.vmem [#allocation9], %s545
        // Predicated region
        $region73: #{tpu_custom_call.1} parent=59 // pred_check
          %p547 = pneg %p176
        $region74: #{tpu_custom_call.1} parent=59 // pred_check_branch
          %549 = sbr.rel (%p547) target = $region76
        $region75: #{tpu_custom_call.1} parent=59 // pred_region
          %550 = dma.done %s543, 1024
        $region76: #{tpu_custom_call.1} parent=59 // pred_fallthru
          _
        %s551 = sand.u32 %s39, 1
        %s552 = scalar_lea.sflag [#allocation10], %s551
        %s553 = sand.u32 %s189, 1
        %s554 = smul.addr %s553, 64
        %s555 = scalar_lea.vmem [#allocation11], %s554
        // Predicated region
        $region77: #{tpu_custom_call.1} parent=59 // pred_check
          %p556 = pneg %p202
        $region78: #{tpu_custom_call.1} parent=59 // pred_check_branch
          %558 = sbr.rel (%p556) target = $region80
        $region79: #{tpu_custom_call.1} parent=59 // pred_region
          %559 = dma.done %s552, 1024
        $region80: #{tpu_custom_call.1} parent=59 // pred_fallthru
          _
        // Predicated region
        $region81: #{tpu_custom_call.1} parent=59 // pred_check
          %p560 = pneg %p296
        $region82: #{tpu_custom_call.1} parent=59 // pred_check_branch
          %562 = sbr.rel (%p560) target = $region84
        $region83: #{tpu_custom_call.1} parent=59 // pred_region
          %563 = dma.done [#allocation13], 2048
        $region84: #{tpu_custom_call.1} parent=59 // pred_fallthru
          _
        %s564 = sand.u32 %s59, 1
        %s565 = scalar_lea.sflag [#allocation4], %s564
        %s566 = sand.u32 %s59, 1
        %s567 = smul.addr %s566, 16
        %s568 = scalar_lea.vmem [#allocation3], %s567
        %p569 = pneg %p72
        %p570 = pneg %p69
        %p571 = scmp.lt.s32.totalorder %s43, 1
        %s572 = scalar_select %p571, %s43, 1
        %s573 = smul.addr %s572, 4
        %s574 = scalar_lea.vmem %s1, %s573
        %p575 = pneg %p98
        %p576 = pneg %p95
        %s577 = sand.u32 %s39, 1
        %s578 = scalar_lea.sflag [#allocation7], %s577
        %s579 = sand.u32 %s111, 1
        %s580 = smul.addr %s579, 192
        %s581 = scalar_lea.vmem [#allocation6], %s580
        %p582 = pneg %p124
        %p583 = pneg %p121
        %s584 = sand.u32 %s39, 1
        %s585 = scalar_lea.sflag [#allocation7], %s584
        %s586 = sand.u32 %s137, 1
        %s587 = smul.addr %s586, 64
        %s588 = scalar_lea.vmem [#allocation8], %s587
        %p589 = pneg %p150
        %p590 = pneg %p147
        %s591 = sand.u32 %s39, 1
        %s592 = scalar_lea.sflag [#allocation10], %s591
        %s593 = sand.u32 %s163, 1
        %s594 = smul.addr %s593, 64
        %s595 = scalar_lea.vmem [#allocation9], %s594
        %p596 = pneg %p176
        %p597 = pneg %p173
        %s598 = sand.u32 %s39, 1
        %s599 = scalar_lea.sflag [#allocation10], %s598
        %s600 = sand.u32 %s189, 1
        %s601 = smul.addr %s600, 64
        %s602 = scalar_lea.vmem [#allocation11], %s601
        %p603 = pneg %p202
        %p604 = pneg %p199
        %p605 = scmp.lt.s32.totalorder %s44, 1
        %s606 = scalar_select %p605, %s44, 1
        %s607 = smul.addr %s606, 8
        %s608 = scalar_lea.vmem %s6, %s607
        %p609 = pneg %p228
        %p610 = pneg %p225
        %p611 = scmp.lt.s32.totalorder %s44, 1
        %s612 = scalar_select %p611, %s44, 1
        %s613 = scalar_lea.vmem %s7, %s612
        %p614 = pneg %p254
        %p615 = pneg %p251
        %p616 = pneg %p275
        %p617 = pneg %p272
        %p618 = pneg %p296
        %p619 = pneg %p293
        %p620 = pneg %p322
        %p621 = pneg %p319
        %s622 = sand.u32 %s309, 1
        %s623 = scalar_lea.sflag [#allocation5], %s622
        %s624 = sand.u32 %s309, 1
        %s625 = smul.addr %s624, 2
        %s626 = scalar_lea.vmem [#allocation14], %s625
        %p627 = pneg %p348
        %p628 = pneg %p345
        %s629 = sand.u32 %s335, 1
        %s630 = scalar_lea.sflag [#allocation16], %s629
        %s631 = sand.u32 %s335, 1
        %s632 = scalar_lea.vmem [#allocation15], %s631
        %p633 = scmp.lt.s32.totalorder %s43, 1
        %s634 = scalar_select %p633, %s43, 1
        %s635 = smul.addr %s634, 4
        %s636 = scalar_lea.vmem %s1, %s635
        %p637 = scmp.lt.s32.totalorder %s44, 1
        %s638 = scalar_select %p637, %s44, 1
        %s639 = smul.addr %s638, 8
        %s640 = scalar_lea.vmem %s6, %s639
        %p641 = scmp.lt.s32.totalorder %s44, 1
        %s642 = scalar_select %p641, %s44, 1
        %s643 = scalar_lea.vmem %s7, %s642
        %p645 = scmp.eq.s32.totalorder %s44, 0
        // Predicated region
        $region85: #{tpu_custom_call.1} parent=59 // pred_check
          %p646 = pneg %p645
        $region86: #{tpu_custom_call.1} parent=59 // pred_check_branch
          %648 = sbr.rel (%p646) target = $region88
        $region87: #{tpu_custom_call.1} parent=59 // pred_region
          %v649 = vld [vmem:[%s519] sm:$0xff]
          %v650 = vld [vmem:[%s519 + $0x8] sm:$0xff]
          %651 = vst [vmem:[#allocation2] sm:$0xff] %v649
          %652 = vst [vmem:[#allocation2 + $0x8] sm:$0xff] %v650
        $region88: #{tpu_custom_call.1} parent=59 // pred_fallthru
          _
        %v653 = vld [vmem:[#allocation2] sm:$0xff]
        %v654 = vld [vmem:[#allocation2 + $0x8] sm:$0xff]
        %v655 = vld [vmem:[%s640] sm:$0x3f]
        %656 = vadd.xlane.f32.xlu0 %v653
        %v657 = vpop.xlane.xlu0 %656
        %658 = vadd.xlane.f32.xlu0 %v654
        %v659 = vpop.xlane.xlu0 %658
        %v660 = vrcp.pop 128.0
        %v661 = vmul.f32 %v657, %v660
        %v662 = vmul.f32 %v659, %v660
        %v663 = vsub.f32 %v653, %v661
        %v664 = vsub.f32 %v654, %v662
        %v665 = vmul.f32 %v663, %v663
        %v666 = vmul.f32 %v664, %v664
        %667 = vadd.xlane.f32.xlu0 %v665
        %v668 = vpop.xlane.xlu0 %667
        %669 = vadd.xlane.f32.xlu0 %v666
        %v670 = vpop.xlane.xlu0 %669
        %v671 = vmul.f32 %v668, %v660
        %v672 = vmul.f32 %v670, %v660
        %v673 = vadd.f32 %v671, 1e-05
        %v674 = vadd.f32 %v672, 1e-05
        %v675 = vrsqrt.pop %v673
        %v676 = vrsqrt.pop %v674
        %v677 = vmul.f32 %v663, %v675
        %v678 = vmul.f32 %v664, %v676
        %v679 = vlaneseq
        %v680 = vshrl.u32 %v679, 7
        %v681 = vsub.s32 0, %v680
        %v682 = vrot.slane %v655, %v681
        %v683 = vmul.f32 %v677, %v682
        %v684 = vmul.f32 %v678, %v682
        %v685 = vlaneseq
        %v686 = vshrl.u32 %v685, 7
        %v687 = vsub.s32 1, %v686
        %v688 = vrot.slane %v655, %v687
        %v689 = vadd.f32 %v683, %v688
        %v690 = vadd.f32 %v684, %v688
        %v691 = vpack.c.bf16 %v690, %v689
        %v692 = vld [vmem:[%s528] sm:$0xff]
        %v693 = vld [vmem:[%s528 + $0x8] sm:$0xf]
        %v694 = vld [vmem:[%s528 + $0xc] sm:$0xff]
        %v695 = vld [vmem:[%s528 + $0x14] sm:$0xf]
        %v696 = vld [vmem:[%s528 + $0x18] sm:$0xff]
        %v697 = vld [vmem:[%s528 + $0x20] sm:$0xf]
        %v698 = vld [vmem:[%s528 + $0x24] sm:$0xff]
        %v699 = vld [vmem:[%s528 + $0x2c] sm:$0xf]
        %v700 = vld [vmem:[%s528 + $0x30] sm:$0xff]
        %v701 = vld [vmem:[%s528 + $0x38] sm:$0xf]
        %v702 = vld [vmem:[%s528 + $0x3c] sm:$0xff]
        %v703 = vld [vmem:[%s528 + $0x44] sm:$0xf]
        %v704 = vld [vmem:[%s528 + $0x48] sm:$0xff]
        %v705 = vld [vmem:[%s528 + $0x50] sm:$0xf]
        %v706 = vld [vmem:[%s528 + $0x54] sm:$0xff]
        %v707 = vld [vmem:[%s528 + $0x5c] sm:$0xf]
        %v708 = vld [vmem:[%s528 + $0x60] sm:$0xff]
        %v709 = vld [vmem:[%s528 + $0x68] sm:$0xf]
        %v710 = vld [vmem:[%s528 + $0x6c] sm:$0xff]
        %v711 = vld [vmem:[%s528 + $0x74] sm:$0xf]
        %v712 = vld [vmem:[%s528 + $0x78] sm:$0xff]
        %v713 = vld [vmem:[%s528 + $0x80] sm:$0xf]
        %v714 = vld [vmem:[%s528 + $0x84] sm:$0xff]
        %v715 = vld [vmem:[%s528 + $0x8c] sm:$0xf]
        %v716 = vld [vmem:[%s528 + $0x90] sm:$0xff]
        %v717 = vld [vmem:[%s528 + $0x98] sm:$0xf]
        %v718 = vld [vmem:[%s528 + $0x9c] sm:$0xff]
        %v719 = vld [vmem:[%s528 + $0xa4] sm:$0xf]
        %v720 = vld [vmem:[%s528 + $0xa8] sm:$0xff]
        %v721 = vld [vmem:[%s528 + $0xb0] sm:$0xf]
        %v722 = vld [vmem:[%s528 + $0xb4] sm:$0xff]
        %v723 = vld [vmem:[%s528 + $0xbc] sm:$0xf]
        %v756 = vunpack.c.l.b16 %v692
        %v757 = vunpack.c.h.b16 %v692
        %v758 = vunpack.c.l.b16 %v693
        %v759 = vunpack.c.l.b16 %v694
        %v760 = vunpack.c.h.b16 %v694
        %v761 = vunpack.c.l.b16 %v695
        %v762 = vunpack.c.l.b16 %v696
        %v763 = vunpack.c.h.b16 %v696
        %v764 = vunpack.c.l.b16 %v697
        %v765 = vunpack.c.l.b16 %v698
        %v766 = vunpack.c.h.b16 %v698
        %v767 = vunpack.c.l.b16 %v699
        %v768 = vunpack.c.l.b16 %v700
        %v769 = vunpack.c.h.b16 %v700
        %v770 = vunpack.c.l.b16 %v701
        %v771 = vunpack.c.l.b16 %v702
        %v772 = vunpack.c.h.b16 %v702
        %v773 = vunpack.c.l.b16 %v703
        %v774 = vunpack.c.l.b16 %v704
        %v775 = vunpack.c.h.b16 %v704
        %v776 = vunpack.c.l.b16 %v705
        %v777 = vunpack.c.l.b16 %v706
        %v778 = vunpack.c.h.b16 %v706
        %v779 = vunpack.c.l.b16 %v707
        %v780 = vunpack.c.l.b16 %v708
        %v781 = vunpack.c.h.b16 %v708
        %v782 = vunpack.c.l.b16 %v709
        %v783 = vunpack.c.l.b16 %v710
        %v784 = vunpack.c.h.b16 %v710
        %v785 = vunpack.c.l.b16 %v711
        %v786 = vunpack.c.l.b16 %v712
        %v787 = vunpack.c.h.b16 %v712
        %v788 = vunpack.c.l.b16 %v713
        %v789 = vunpack.c.l.b16 %v714
        %v790 = vunpack.c.h.b16 %v714
        %v791 = vunpack.c.l.b16 %v715
        %v792 = vunpack.c.l.b16 %v716
        %v793 = vunpack.c.h.b16 %v716
        %v794 = vunpack.c.l.b16 %v717
        %v795 = vunpack.c.l.b16 %v718
        %v796 = vunpack.c.h.b16 %v718
        %v797 = vunpack.c.l.b16 %v719
        %v798 = vunpack.c.l.b16 %v720
        %v799 = vunpack.c.h.b16 %v720
        %v800 = vunpack.c.l.b16 %v721
        %v801 = vunpack.c.l.b16 %v722
        %v802 = vunpack.c.h.b16 %v722
        %v803 = vunpack.c.l.b16 %v723
        %v804 = vpack.c.b16 %v759, %v756
        %v805 = vpack.c.b16 %v760, %v757
        %v806 = vpack.c.b16 %v761, %v758
        %v807 = vpack.c.b16 %v765, %v762
        %v808 = vpack.c.b16 %v766, %v763
        %v809 = vpack.c.b16 %v767, %v764
        %v810 = vpack.c.b16 %v771, %v768
        %v811 = vpack.c.b16 %v772, %v769
        %v812 = vpack.c.b16 %v773, %v770
        %v813 = vpack.c.b16 %v777, %v774
        %v814 = vpack.c.b16 %v778, %v775
        %v815 = vpack.c.b16 %v779, %v776
        %v816 = vpack.c.b16 %v783, %v780
        %v817 = vpack.c.b16 %v784, %v781
        %v818 = vpack.c.b16 %v785, %v782
        %v819 = vpack.c.b16 %v789, %v786
        %v820 = vpack.c.b16 %v790, %v787
        %v821 = vpack.c.b16 %v791, %v788
        %v822 = vpack.c.b16 %v795, %v792
        %v823 = vpack.c.b16 %v796, %v793
        %v824 = vpack.c.b16 %v797, %v794
        %v825 = vpack.c.b16 %v801, %v798
        %v826 = vpack.c.b16 %v802, %v799
        %v827 = vpack.c.b16 %v803, %v800
        %852 = vmatprep.subr.bf16.mxu0 %v805
        %853 = vmatpush1.bf16.msra.mxu0 %v804
        %854 = vmatprep.subr.bf16.mxu0 %v808
        %855 = vmatpush1.bf16.msra.mxu0 %v807
        %856 = vmatprep.subr.bf16.mxu0 %v811
        %857 = vmatpush1.bf16.msra.mxu0 %v810
        %858 = vmatprep.subr.bf16.mxu0 %v814
        %859 = vmatpush1.bf16.msra.mxu0 %v813
        %860 = vmatprep.subr.bf16.mxu0 %v817
        %861 = vmatpush1.bf16.msra.mxu0 %v816
        %862 = vmatprep.subr.bf16.mxu0 %v820
        %863 = vmatpush1.bf16.msra.mxu0 %v819
        %864 = vmatprep.subr.bf16.mxu0 %v823
        %865 = vmatpush1.bf16.msra.mxu0 %v822
        %866 = vmatprep.subr.bf16.mxu0 %v826
        %867 = vmatpush1.bf16.msra.mxu0 %v825
        %868 = vmatprep.subr.bf16.mxu0 0
        %869 = vmatpush1.bf16.msra.mxu0 0
        %870 = vmatprep.subr.bf16.mxu0 0
        %871 = vmatpush1.bf16.msra.mxu0 0
        %872 = vmatprep.subr.bf16.mxu0 0
        %873 = vmatpush1.bf16.msra.mxu0 0
        %874 = vmatprep.subr.bf16.mxu0 0
        %875 = vmatpush1.bf16.msra.mxu0 0
        %876 = vmatprep.subr.bf16.mxu0 0
        %877 = vmatpush1.bf16.msra.mxu0 0
        %878 = vmatprep.subr.bf16.mxu0 0
        %879 = vmatpush1.bf16.msra.mxu0 0
        %880 = vmatprep.subr.bf16.mxu0 0
        %881 = vmatpush1.bf16.msra.mxu0 0
        %882 = vmatprep.subr.bf16.mxu0 0
        %883 = vmatpush1.bf16.msra.mxu0 0
        %884 = vmatprep.mubr.bf16.mxu0 0
        %885 = vmatmul.mubr.bf16.gmra.mrb[0].mxu0 %v691
        %v886 = vpop.f32.mrb[0].mxu0
        %v887 = vadd.f32 0.0, %v886
        %v888 = vpop.f32.mrb[0].mxu0
        %v889 = vadd.f32 0.0, %v888
        %v890 = vpop.f32.mrb[0].mxu0
        %v891 = vadd.f32 0.0, %v890
        %v892 = vpop.f32.mrb[0].mxu0
        %v893 = vadd.f32 0.0, %v892
        %894 = vdwg.mxu0
        %895 = vmatprep.subr.bf16.mxu0 0
        %896 = vmatpush1.bf16.msra.mxu0 %v806
        %897 = vmatprep.subr.bf16.mxu0 0
        %898 = vmatpush1.bf16.msra.mxu0 %v809
        %899 = vmatprep.subr.bf16.mxu0 0
        %900 = vmatpush1.bf16.msra.mxu0 %v812
        %901 = vmatprep.subr.bf16.mxu0 0
        %902 = vmatpush1.bf16.msra.mxu0 %v815
        %903 = vmatprep.subr.bf16.mxu0 0
        %904 = vmatpush1.bf16.msra.mxu0 %v818
        %905 = vmatprep.subr.bf16.mxu0 0
        %906 = vmatpush1.bf16.msra.mxu0 %v821
        %907 = vmatprep.subr.bf16.mxu0 0
        %908 = vmatpush1.bf16.msra.mxu0 %v824
        %909 = vmatprep.subr.bf16.mxu0 0
        %910 = vmatpush1.bf16.msra.mxu0 %v827
        %911 = vmatprep.subr.bf16.mxu0 0
        %912 = vmatpush1.bf16.msra.mxu0 0
        %913 = vmatprep.subr.bf16.mxu0 0
        %914 = vmatpush1.bf16.msra.mxu0 0
        %915 = vmatprep.subr.bf16.mxu0 0
        %916 = vmatpush1.bf16.msra.mxu0 0
        %917 = vmatprep.subr.bf16.mxu0 0
        %918 = vmatpush1.bf16.msra.mxu0 0
        %919 = vmatprep.subr.bf16.mxu0 0
        %920 = vmatpush1.bf16.msra.mxu0 0
        %921 = vmatprep.subr.bf16.mxu0 0
        %922 = vmatpush1.bf16.msra.mxu0 0
        %923 = vmatprep.subr.bf16.mxu0 0
        %924 = vmatpush1.bf16.msra.mxu0 0
        %925 = vmatprep.subr.bf16.mxu0 0
        %926 = vmatpush1.bf16.msra.mxu0 0
        %927 = vmatprep.mubr.bf16.mxu0 0
        %928 = vmatmul.mubr.bf16.gmra.mrb[0].mxu0 %v691
        %v929 = vpop.f32.mrb[0].mxu0
        %v930 = vadd.f32 0.0, %v929
        %v931 = vpop.f32.mrb[0].mxu0
        %v932 = vpop.f32.mrb[0].mxu0
        %v933 = vadd.f32 0.0, %v932
        %v934 = vpop.f32.mrb[0].mxu0
        %935 = vdwg.mxu0
        %v936 = vpack.c.bf16 %v891, %v887
        %v937 = vpack.c.bf16 %v893, %v889
        %v938 = vpack.c.bf16 %v933, %v930
        %v939 = vlaneseq
        %v940 = vand.u32 %v939, 127
        %vm941 = vcmp.lt.s32.totalorder %v940, 10
        %vm942 = vcmask 523264
        %v944 = vsel %vm942, %v936, 0
        %v947 = vsel %vm942, %v937, 0
        %949 = vmatprep.subr.bf16.mxu0 0
        %950 = vmatpush1.bf16.xpose.msra.mxu0 %v947
        %951 = vmatprep.subr.bf16.mxu0 0
        %952 = vmatpush1.bf16.xpose.msra.mxu0 0
        %953 = vmatprep.subr.bf16.mxu0 0
        %954 = vmatpush1.bf16.xpose.msra.mxu0 0
        %955 = vmatprep.subr.bf16.mxu0 0
        %956 = vmatpush1.bf16.xpose.msra.mxu0 0
        %957 = vmatprep.subr.bf16.mxu0 0
        %958 = vmatpush1.bf16.xpose.msra.mxu0 0
        %959 = vmatprep.subr.bf16.mxu0 0
        %960 = vmatpush1.bf16.xpose.msra.mxu0 0
        %961 = vmatprep.subr.bf16.mxu0 0
        %962 = vmatpush1.bf16.xpose.msra.mxu0 0
        %963 = vmatprep.subr.bf16.mxu0 0
        %964 = vmatpush1.bf16.xpose.msra.mxu0 0
        %965 = vmatprep.subr.bf16.mxu0 0
        %966 = vmatpush1.bf16.xpose.msra.mxu0 0
        %967 = vmatprep.subr.bf16.mxu0 0
        %968 = vmatpush1.bf16.xpose.msra.mxu0 0
        %969 = vmatprep.subr.bf16.mxu0 0
        %970 = vmatpush1.bf16.xpose.msra.mxu0 0
        %971 = vmatprep.subr.bf16.mxu0 0
        %972 = vmatpush1.bf16.xpose.msra.mxu0 0
        %973 = vmatprep.subr.bf16.mxu0 0
        %974 = vmatpush1.bf16.xpose.msra.mxu0 0
        %975 = vmatprep.subr.bf16.mxu0 0
        %976 = vmatpush1.bf16.xpose.msra.mxu0 0
        %977 = vmatprep.subr.bf16.mxu0 0
        %978 = vmatpush1.bf16.xpose.msra.mxu0 0
        %979 = vmatprep.subr.bf16.mxu0 0
        %980 = vmatpush1.bf16.xpose.msra.mxu0 0
        %981 = vmatprep.mubr.bf16.mxu0 0
        %982 = vmatmul.mubr.bf16.gmra.mrb[0].mxu0 %v944
        %v983 = vpop.f32.mrb[0].mxu0
        %v984 = vadd.f32 0.0, %v983
        %v985 = vpop.f32.mrb[0].mxu0
        %v986 = vpop.f32.mrb[0].mxu0
        %v987 = vadd.f32 0.0, %v986
        %v988 = vpop.f32.mrb[0].mxu0
        %989 = vdwg.mxu0
        %v990 = vsel %vm941, 1, 0
        %vm991 = vcmp.eq.s32.totalorder %v990, 1
        %v992 = vsel %vm991, %v984, -1e+30
        %v993 = vsel %vm991, %v987, -1e+30
        %vm994 = vcmask 130048
        %v995 = vsel %vm994, %v992, -inf
        %996 = vmax.xlane.f32.xlu0 %v995
        %v997 = vpop.xlane.xlu0 %996
        %v998 = vsel %vm994, %v993, -inf
        %999 = vmax.xlane.f32.xlu0 %v998
        %v1000 = vpop.xlane.xlu0 %999
        %v1001 = vsub.f32 %v992, %v997
        %v1002 = vsub.f32 %v993, %v1000
        %v1003 = vmul.f32 %v1001, 1.442695
        %v1004 = vpow.pop %v1003
        %v1005 = vmul.f32 %v1002, 1.442695
        %v1006 = vpow.pop %v1005
        %v1007 = vsel %vm994, %v1004, 0.0
        %1008 = vadd.xlane.f32.xlu0 %v1007
        %v1009 = vpop.xlane.xlu0 %1008
        %v1010 = vsel %vm994, %v1006, 0.0
        %1011 = vadd.xlane.f32.xlu0 %v1010
        %v1012 = vpop.xlane.xlu0 %1011
        %v1013 = vrcp.pop %v1009
        %v1014 = vrcp.pop %v1012
        %v1015 = vmul.f32 %v1004, %v1013
        %v1016 = vmul.f32 %v1006, %v1014
        %v1017 = vpack.c.bf16 %v1016, %v1015
        %v1019 = vsel %vm994, %v1017, 0
        %1021 = vmatprep.subr.bf16.mxu0 0
        %1022 = vmatpush1.bf16.msra.mxu0 %v938
        %1023 = vmatprep.subr.bf16.mxu0 0
        %1024 = vmatpush1.bf16.msra.mxu0 0
        %1025 = vmatprep.subr.bf16.mxu0 0
        %1026 = vmatpush1.bf16.msra.mxu0 0
        %1027 = vmatprep.subr.bf16.mxu0 0
        %1028 = vmatpush1.bf16.msra.mxu0 0
        %1029 = vmatprep.subr.bf16.mxu0 0
        %1030 = vmatpush1.bf16.msra.mxu0 0
        %1031 = vmatprep.subr.bf16.mxu0 0
        %1032 = vmatpush1.bf16.msra.mxu0 0
        %1033 = vmatprep.subr.bf16.mxu0 0
        %1034 = vmatpush1.bf16.msra.mxu0 0
        %1035 = vmatprep.subr.bf16.mxu0 0
        %1036 = vmatpush1.bf16.msra.mxu0 0
        %1037 = vmatprep.subr.bf16.mxu0 0
        %1038 = vmatpush1.bf16.msra.mxu0 0
        %1039 = vmatprep.subr.bf16.mxu0 0
        %1040 = vmatpush1.bf16.msra.mxu0 0
        %1041 = vmatprep.subr.bf16.mxu0 0
        %1042 = vmatpush1.bf16.msra.mxu0 0
        %1043 = vmatprep.subr.bf16.mxu0 0
        %1044 = vmatpush1.bf16.msra.mxu0 0
        %1045 = vmatprep.subr.bf16.mxu0 0
        %1046 = vmatpush1.bf16.msra.mxu0 0
        %1047 = vmatprep.subr.bf16.mxu0 0
        %1048 = vmatpush1.bf16.msra.mxu0 0
        %1049 = vmatprep.subr.bf16.mxu0 0
        %1050 = vmatpush1.bf16.msra.mxu0 0
        %1051 = vmatprep.subr.bf16.mxu0 0
        %1052 = vmatpush1.bf16.msra.mxu0 0
        %1053 = vmatprep.mubr.bf16.mxu0 0
        %1054 = vmatmul.mubr.bf16.gmra.mrb[0].mxu0 %v1019
        %v1055 = vpop.f32.mrb[0].mxu0
        %v1056 = vadd.f32 0.0, %v1055
        %v1057 = vpop.f32.mrb[0].mxu0
        %v1058 = vpop.f32.mrb[0].mxu0
        %v1059 = vadd.f32 0.0, %v1058
        %v1060 = vpop.f32.mrb[0].mxu0
        %1061 = vdwg.mxu0
        %1063 = vrot.lane.b32.xlu0 %v936, 64
        %v1064 = vpop.permute.xlu0 %1063
        %1066 = vrot.lane.b32.xlu0 %v937, 64
        %v1067 = vpop.permute.xlu0 %1066
        %v1069 = vsel %vm942, %v1064, 0
        %v1072 = vsel %vm942, %v1067, 0
        %1074 = vmatprep.subr.bf16.mxu0 0
        %1075 = vmatpush1.bf16.xpose.msra.mxu0 %v1072
        %1076 = vmatprep.subr.bf16.mxu0 0
        %1077 = vmatpush1.bf16.xpose.msra.mxu0 0
        %1078 = vmatprep.subr.bf16.mxu0 0
        %1079 = vmatpush1.bf16.xpose.msra.mxu0 0
        %1080 = vmatprep.subr.bf16.mxu0 0
        %1081 = vmatpush1.bf16.xpose.msra.mxu0 0
        %1082 = vmatprep.subr.bf16.mxu0 0
        %1083 = vmatpush1.bf16.xpose.msra.mxu0 0
        %1084 = vmatprep.subr.bf16.mxu0 0
        %1085 = vmatpush1.bf16.xpose.msra.mxu0 0
        %1086 = vmatprep.subr.bf16.mxu0 0
        %1087 = vmatpush1.bf16.xpose.msra.mxu0 0
        %1088 = vmatprep.subr.bf16.mxu0 0
        %1089 = vmatpush1.bf16.xpose.msra.mxu0 0
        %1090 = vmatprep.subr.bf16.mxu0 0
        %1091 = vmatpush1.bf16.xpose.msra.mxu0 0
        %1092 = vmatprep.subr.bf16.mxu0 0
        %1093 = vmatpush1.bf16.xpose.msra.mxu0 0
        %1094 = vmatprep.subr.bf16.mxu0 0
        %1095 = vmatpush1.bf16.xpose.msra.mxu0 0
        %1096 = vmatprep.subr.bf16.mxu0 0
        %1097 = vmatpush1.bf16.xpose.msra.mxu0 0
        %1098 = vmatprep.subr.bf16.mxu0 0
        %1099 = vmatpush1.bf16.xpose.msra.mxu0 0
        %1100 = vmatprep.subr.bf16.mxu0 0
        %1101 = vmatpush1.bf16.xpose.msra.mxu0 0
        %1102 = vmatprep.subr.bf16.mxu0 0
        %1103 = vmatpush1.bf16.xpose.msra.mxu0 0
        %1104 = vmatprep.subr.bf16.mxu0 0
        %1105 = vmatpush1.bf16.xpose.msra.mxu0 0
        %1106 = vmatprep.mubr.bf16.mxu0 0
        %1107 = vmatmul.mubr.bf16.gmra.mrb[0].mxu0 %v1069
        %v1108 = vpop.f32.mrb[0].mxu0
        %v1109 = vadd.f32 0.0, %v1108
        %v1110 = vpop.f32.mrb[0].mxu0
        %v1111 = vpop.f32.mrb[0].mxu0
        %v1112 = vadd.f32 0.0, %v1111
        %v1113 = vpop.f32.mrb[0].mxu0
        %1114 = vdwg.mxu0
        %v1115 = vsel %vm991, %v1109, -1e+30
        %v1116 = vsel %vm991, %v1112, -1e+30
        %v1117 = vsel %vm994, %v1115, -inf
        %1118 = vmax.xlane.f32.xlu0 %v1117
        %v1119 = vpop.xlane.xlu0 %1118
        %v1120 = vsel %vm994, %v1116, -inf
        %1121 = vmax.xlane.f32.xlu0 %v1120
        %v1122 = vpop.xlane.xlu0 %1121
        %v1123 = vsub.f32 %v1115, %v1119
        %v1124 = vsub.f32 %v1116, %v1122
        %v1125 = vmul.f32 %v1123, 1.442695
        %v1126 = vpow.pop %v1125
        %v1127 = vmul.f32 %v1124, 1.442695
        %v1128 = vpow.pop %v1127
        %v1129 = vsel %vm994, %v1126, 0.0
        %1130 = vadd.xlane.f32.xlu0 %v1129
        %v1131 = vpop.xlane.xlu0 %1130
        %v1132 = vsel %vm994, %v1128, 0.0
        %1133 = vadd.xlane.f32.xlu0 %v1132
        %v1134 = vpop.xlane.xlu0 %1133
        %v1135 = vrcp.pop %v1131
        %v1136 = vrcp.pop %v1134
        %v1137 = vmul.f32 %v1126, %v1135
        %v1138 = vmul.f32 %v1128, %v1136
        %v1139 = vpack.c.bf16 %v1138, %v1137
        %1141 = vrot.lane.b32.xlu0 %v938, 64
        %v1142 = vpop.permute.xlu0 %1141
        %v1145 = vsel %vm994, %v1139, 0
        %1147 = vmatprep.subr.bf16.mxu0 0
        %1148 = vmatpush1.bf16.msra.mxu0 %v1142
        %1149 = vmatprep.subr.bf16.mxu0 0
        %1150 = vmatpush1.bf16.msra.mxu0 0
        %1151 = vmatprep.subr.bf16.mxu0 0
        %1152 = vmatpush1.bf16.msra.mxu0 0
        %1153 = vmatprep.subr.bf16.mxu0 0
        %1154 = vmatpush1.bf16.msra.mxu0 0
        %1155 = vmatprep.subr.bf16.mxu0 0
        %1156 = vmatpush1.bf16.msra.mxu0 0
        %1157 = vmatprep.subr.bf16.mxu0 0
        %1158 = vmatpush1.bf16.msra.mxu0 0
        %1159 = vmatprep.subr.bf16.mxu0 0
        %1160 = vmatpush1.bf16.msra.mxu0 0
        %1161 = vmatprep.subr.bf16.mxu0 0
        %1162 = vmatpush1.bf16.msra.mxu0 0
        %1163 = vmatprep.subr.bf16.mxu0 0
        %1164 = vmatpush1.bf16.msra.mxu0 0
        %1165 = vmatprep.subr.bf16.mxu0 0
        %1166 = vmatpush1.bf16.msra.mxu0 0
        %1167 = vmatprep.subr.bf16.mxu0 0
        %1168 = vmatpush1.bf16.msra.mxu0 0
        %1169 = vmatprep.subr.bf16.mxu0 0
        %1170 = vmatpush1.bf16.msra.mxu0 0
        %1171 = vmatprep.subr.bf16.mxu0 0
        %1172 = vmatpush1.bf16.msra.mxu0 0
        %1173 = vmatprep.subr.bf16.mxu0 0
        %1174 = vmatpush1.bf16.msra.mxu0 0
        %1175 = vmatprep.subr.bf16.mxu0 0
        %1176 = vmatpush1.bf16.msra.mxu0 0
        %1177 = vmatprep.subr.bf16.mxu0 0
        %1178 = vmatpush1.bf16.msra.mxu0 0
        %1179 = vmatprep.mubr.bf16.mxu0 0
        %1180 = vmatmul.mubr.bf16.gmra.mrb[0].mxu0 %v1145
        %v1181 = vpop.f32.mrb[0].mxu0
        %v1182 = vadd.f32 0.0, %v1181
        %v1183 = vpop.f32.mrb[0].mxu0
        %v1184 = vpop.f32.mrb[0].mxu0
        %v1185 = vadd.f32 0.0, %v1184
        %v1186 = vpop.f32.mrb[0].mxu0
        %1187 = vdwg.mxu0
        %1190 = vrot.lane.b32.xlu0 %v1182, 64
        %v1191 = vpop.permute.xlu0 %1190
        %1192 = vrot.lane.b32.xlu0 %v1185, 64
        %v1193 = vpop.permute.xlu0 %1192
        %v1196 = vsel %vm942, %v1056, %v1191
        %v1197 = vsel %vm942, %v1059, %v1193
        %v1198 = vpack.c.bf16 %v1197, %v1196
        %v1199 = vld [vmem:[%s537] sm:$0xf]
        %v1200 = vld [vmem:[%s537 + $0x4] sm:$0xf]
        %v1201 = vld [vmem:[%s537 + $0x8] sm:$0xf]
        %v1202 = vld [vmem:[%s537 + $0xc] sm:$0xf]
        %v1203 = vld [vmem:[%s537 + $0x10] sm:$0xf]
        %v1204 = vld [vmem:[%s537 + $0x14] sm:$0xf]
        %v1205 = vld [vmem:[%s537 + $0x18] sm:$0xf]
        %v1206 = vld [vmem:[%s537 + $0x1c] sm:$0xf]
        %v1207 = vld [vmem:[%s537 + $0x20] sm:$0xf]
        %v1208 = vld [vmem:[%s537 + $0x24] sm:$0xf]
        %v1209 = vld [vmem:[%s537 + $0x28] sm:$0xf]
        %v1210 = vld [vmem:[%s537 + $0x2c] sm:$0xf]
        %v1211 = vld [vmem:[%s537 + $0x30] sm:$0xf]
        %v1212 = vld [vmem:[%s537 + $0x34] sm:$0xf]
        %v1213 = vld [vmem:[%s537 + $0x38] sm:$0xf]
        %v1214 = vld [vmem:[%s537 + $0x3c] sm:$0xf]
        %v1231 = vunpack.c.l.b16 %v1199
        %v1232 = vunpack.c.l.b16 %v1200
        %v1233 = vunpack.c.l.b16 %v1201
        %v1234 = vunpack.c.l.b16 %v1202
        %v1235 = vunpack.c.l.b16 %v1203
        %v1236 = vunpack.c.l.b16 %v1204
        %v1237 = vunpack.c.l.b16 %v1205
        %v1238 = vunpack.c.l.b16 %v1206
        %v1239 = vunpack.c.l.b16 %v1207
        %v1240 = vunpack.c.l.b16 %v1208
        %v1241 = vunpack.c.l.b16 %v1209
        %v1242 = vunpack.c.l.b16 %v1210
        %v1243 = vunpack.c.l.b16 %v1211
        %v1244 = vunpack.c.l.b16 %v1212
        %v1245 = vunpack.c.l.b16 %v1213
        %v1246 = vunpack.c.l.b16 %v1214
        %v1247 = vpack.c.b16 %v1232, %v1231
        %v1248 = vpack.c.b16 %v1234, %v1233
        %v1249 = vpack.c.b16 %v1236, %v1235
        %v1250 = vpack.c.b16 %v1238, %v1237
        %v1251 = vpack.c.b16 %v1240, %v1239
        %v1252 = vpack.c.b16 %v1242, %v1241
        %v1253 = vpack.c.b16 %v1244, %v1243
        %v1254 = vpack.c.b16 %v1246, %v1245
        %1263 = vmatprep.subr.bf16.mxu0 0
        %1264 = vmatpush1.bf16.msra.mxu0 %v1247
        %1265 = vmatprep.subr.bf16.mxu0 0
        %1266 = vmatpush1.bf16.msra.mxu0 %v1248
        %1267 = vmatprep.subr.bf16.mxu0 0
        %1268 = vmatpush1.bf16.msra.mxu0 %v1249
        %1269 = vmatprep.subr.bf16.mxu0 0
        %1270 = vmatpush1.bf16.msra.mxu0 %v1250
        %1271 = vmatprep.subr.bf16.mxu0 0
        %1272 = vmatpush1.bf16.msra.mxu0 %v1251
        %1273 = vmatprep.subr.bf16.mxu0 0
        %1274 = vmatpush1.bf16.msra.mxu0 %v1252
        %1275 = vmatprep.subr.bf16.mxu0 0
        %1276 = vmatpush1.bf16.msra.mxu0 %v1253
        %1277 = vmatprep.subr.bf16.mxu0 0
        %1278 = vmatpush1.bf16.msra.mxu0 %v1254
        %1279 = vmatprep.subr.bf16.mxu0 0
        %1280 = vmatpush1.bf16.msra.mxu0 0
        %1281 = vmatprep.subr.bf16.mxu0 0
        %1282 = vmatpush1.bf16.msra.mxu0 0
        %1283 = vmatprep.subr.bf16.mxu0 0
        %1284 = vmatpush1.bf16.msra.mxu0 0
        %1285 = vmatprep.subr.bf16.mxu0 0
        %1286 = vmatpush1.bf16.msra.mxu0 0
        %1287 = vmatprep.subr.bf16.mxu0 0
        %1288 = vmatpush1.bf16.msra.mxu0 0
        %1289 = vmatprep.subr.bf16.mxu0 0
        %1290 = vmatpush1.bf16.msra.mxu0 0
        %1291 = vmatprep.subr.bf16.mxu0 0
        %1292 = vmatpush1.bf16.msra.mxu0 0
        %1293 = vmatprep.subr.bf16.mxu0 0
        %1294 = vmatpush1.bf16.msra.mxu0 0
        %1295 = vmatprep.mubr.bf16.mxu0 0
        %1296 = vmatmul.mubr.bf16.gmra.mrb[0].mxu0 %v1198
        %v1297 = vpop.f32.mrb[0].mxu0
        %v1298 = vadd.f32 0.0, %v1297
        %v1299 = vpop.f32.mrb[0].mxu0
        %v1300 = vpop.f32.mrb[0].mxu0
        %v1301 = vadd.f32 0.0, %v1300
        %v1302 = vpop.f32.mrb[0].mxu0
        %1303 = vdwg.mxu0
        %v1304 = vadd.f32 %v653, %v1298
        %v1305 = vadd.f32 %v654, %v1301
        %v1306 = vlaneseq
        %v1307 = vshrl.u32 %v1306, 7
        %v1308 = vsub.s32 2, %v1307
        %v1309 = vrot.slane %v655, %v1308
        %v1310 = vadd.f32 %v1304, %v1309
        %v1311 = vadd.f32 %v1305, %v1309
        %1312 = vadd.xlane.f32.xlu0 %v1310
        %v1313 = vpop.xlane.xlu0 %1312
        %1314 = vadd.xlane.f32.xlu0 %v1311
        %v1315 = vpop.xlane.xlu0 %1314
        %v1316 = vmul.f32 %v1313, %v660
        %v1317 = vmul.f32 %v1315, %v660
        %v1318 = vsub.f32 %v1310, %v1316
        %v1319 = vsub.f32 %v1311, %v1317
        %v1320 = vmul.f32 %v1318, %v1318
        %v1321 = vmul.f32 %v1319, %v1319
        %1322 = vadd.xlane.f32.xlu0 %v1320
        %v1323 = vpop.xlane.xlu0 %1322
        %1324 = vadd.xlane.f32.xlu0 %v1321
        %v1325 = vpop.xlane.xlu0 %1324
        %v1326 = vmul.f32 %v1323, %v660
        %v1327 = vmul.f32 %v1325, %v660
        %v1328 = vadd.f32 %v1326, 1e-05
        %v1329 = vadd.f32 %v1327, 1e-05
        %v1330 = vrsqrt.pop %v1328
        %v1331 = vrsqrt.pop %v1329
        %v1332 = vmul.f32 %v1318, %v1330
        %v1333 = vmul.f32 %v1319, %v1331
        %v1334 = vlaneseq
        %v1335 = vshrl.u32 %v1334, 7
        %v1336 = vsub.s32 3, %v1335
        %v1337 = vrot.slane %v655, %v1336
        %v1338 = vmul.f32 %v1332, %v1337
        %v1339 = vmul.f32 %v1333, %v1337
        %v1340 = vlaneseq
        %v1341 = vshrl.u32 %v1340, 7
        %v1342 = vsub.s32 4, %v1341
        %v1343 = vrot.slane %v655, %v1342
        %v1344 = vadd.f32 %v1338, %v1343
        %v1345 = vadd.f32 %v1339, %v1343
        %v1346 = vpack.c.bf16 %v1345, %v1344
        %v1347 = vld [vmem:[%s546] sm:$0xf]
        %v1348 = vld [vmem:[%s546 + $0x4] sm:$0xf]
        %v1349 = vld [vmem:[%s546 + $0x8] sm:$0xf]
        %v1350 = vld [vmem:[%s546 + $0xc] sm:$0xf]
        %v1351 = vld [vmem:[%s546 + $0x10] sm:$0xf]
        %v1352 = vld [vmem:[%s546 + $0x14] sm:$0xf]
        %v1353 = vld [vmem:[%s546 + $0x18] sm:$0xf]
        %v1354 = vld [vmem:[%s546 + $0x1c] sm:$0xf]
        %v1355 = vld [vmem:[%s546 + $0x20] sm:$0xf]
        %v1356 = vld [vmem:[%s546 + $0x24] sm:$0xf]
        %v1357 = vld [vmem:[%s546 + $0x28] sm:$0xf]
        %v1358 = vld [vmem:[%s546 + $0x2c] sm:$0xf]
        %v1359 = vld [vmem:[%s546 + $0x30] sm:$0xf]
        %v1360 = vld [vmem:[%s546 + $0x34] sm:$0xf]
        %v1361 = vld [vmem:[%s546 + $0x38] sm:$0xf]
        %v1362 = vld [vmem:[%s546 + $0x3c] sm:$0xf]
        %v1363 = vld [vmem:[%s643] sm:$0x1]
        %v1365 = vlaneseq
        %v1366 = vshrl.u32 %v1365, 7
        %v1367 = vsub.s32 0, %v1366
        %v1368 = vrot.slane %v1363, %v1367
        %v1386 = vunpack.c.l.b16 %v1347
        %v1387 = vunpack.c.l.b16 %v1348
        %v1388 = vunpack.c.l.b16 %v1349
        %v1389 = vunpack.c.l.b16 %v1350
        %v1390 = vunpack.c.l.b16 %v1351
        %v1391 = vunpack.c.l.b16 %v1352
        %v1392 = vunpack.c.l.b16 %v1353
        %v1393 = vunpack.c.l.b16 %v1354
        %v1394 = vunpack.c.l.b16 %v1355
        %v1395 = vunpack.c.l.b16 %v1356
        %v1396 = vunpack.c.l.b16 %v1357
        %v1397 = vunpack.c.l.b16 %v1358
        %v1398 = vunpack.c.l.b16 %v1359
        %v1399 = vunpack.c.l.b16 %v1360
        %v1400 = vunpack.c.l.b16 %v1361
        %v1401 = vunpack.c.l.b16 %v1362
        %v1402 = vpack.c.b16 %v1387, %v1386
        %v1403 = vpack.c.b16 %v1389, %v1388
        %v1404 = vpack.c.b16 %v1391, %v1390
        %v1405 = vpack.c.b16 %v1393, %v1392
        %v1406 = vpack.c.b16 %v1395, %v1394
        %v1407 = vpack.c.b16 %v1397, %v1396
        %v1408 = vpack.c.b16 %v1399, %v1398
        %v1409 = vpack.c.b16 %v1401, %v1400
        %1418 = vmatprep.subr.bf16.mxu0 0
        %1419 = vmatpush1.bf16.msra.mxu0 %v1402
        %1420 = vmatprep.subr.bf16.mxu0 0
        %1421 = vmatpush1.bf16.msra.mxu0 %v1403
        %1422 = vmatprep.subr.bf16.mxu0 0
        %1423 = vmatpush1.bf16.msra.mxu0 %v1404
        %1424 = vmatprep.subr.bf16.mxu0 0
        %1425 = vmatpush1.bf16.msra.mxu0 %v1405
        %1426 = vmatprep.subr.bf16.mxu0 0
        %1427 = vmatpush1.bf16.msra.mxu0 %v1406
        %1428 = vmatprep.subr.bf16.mxu0 0
        %1429 = vmatpush1.bf16.msra.mxu0 %v1407
        %1430 = vmatprep.subr.bf16.mxu0 0
        %1431 = vmatpush1.bf16.msra.mxu0 %v1408
        %1432 = vmatprep.subr.bf16.mxu0 0
        %1433 = vmatpush1.bf16.msra.mxu0 %v1409
        %1434 = vmatprep.subr.bf16.mxu0 0
        %1435 = vmatpush1.bf16.msra.mxu0 0
        %1436 = vmatprep.subr.bf16.mxu0 0
        %1437 = vmatpush1.bf16.msra.mxu0 0
        %1438 = vmatprep.subr.bf16.mxu0 0
        %1439 = vmatpush1.bf16.msra.mxu0 0
        %1440 = vmatprep.subr.bf16.mxu0 0
        %1441 = vmatpush1.bf16.msra.mxu0 0
        %1442 = vmatprep.subr.bf16.mxu0 0
        %1443 = vmatpush1.bf16.msra.mxu0 0
        %1444 = vmatprep.subr.bf16.mxu0 0
        %1445 = vmatpush1.bf16.msra.mxu0 0
        %1446 = vmatprep.subr.bf16.mxu0 0
        %1447 = vmatpush1.bf16.msra.mxu0 0
        %1448 = vmatprep.subr.bf16.mxu0 0
        %1449 = vmatpush1.bf16.msra.mxu0 0
        %1450 = vmatprep.mubr.bf16.mxu0 0
        %1451 = vmatmul.mubr.bf16.gmra.mrb[0].mxu0 %v1346
        %v1452 = vpop.f32.mrb[0].mxu0
        %v1453 = vadd.f32 %v1368, %v1452
        %v1454 = vpop.f32.mrb[0].mxu0
        %v1455 = vpop.f32.mrb[0].mxu0
        %v1456 = vadd.f32 %v1368, %v1455
        %v1457 = vpop.f32.mrb[0].mxu0
        %1458 = vdwg.mxu0
        %v1459 = vmul.f32 %v1453, %v1453
        %v1460 = vmul.f32 %v1456, %v1456
        %v1461 = vmul.f32 %v1453, %v1459
        %v1462 = vmul.f32 %v1456, %v1460
        %v1463 = vmul.f32 %v1461, 0.044715
        %v1464 = vmul.f32 %v1462, 0.044715
        %v1465 = vadd.f32 %v1453, %v1463
        %v1466 = vadd.f32 %v1456, %v1464
        %v1467 = vmul.f32 %v1465, 0.7978846
        %v1468 = vmul.f32 %v1466, 0.7978846
        %v1469 = vtanh.pop %v1467
        %v1470 = vtanh.pop %v1468
        %v1471 = vadd.f32 %v1469, 1.0
        %v1472 = vadd.f32 %v1470, 1.0
        %v1473 = vmul.f32 %v1471, 0.5
        %v1474 = vmul.f32 %v1472, 0.5
        %v1475 = vmul.f32 %v1453, %v1473
        %v1476 = vmul.f32 %v1456, %v1474
        %v1477 = vpack.c.bf16 %v1476, %v1475
        %v1478 = vld [vmem:[%s555] sm:$0xf]
        %v1479 = vld [vmem:[%s555 + $0x4] sm:$0xf]
        %v1480 = vld [vmem:[%s555 + $0x8] sm:$0xf]
        %v1481 = vld [vmem:[%s555 + $0xc] sm:$0xf]
        %v1482 = vld [vmem:[%s555 + $0x10] sm:$0xf]
        %v1483 = vld [vmem:[%s555 + $0x14] sm:$0xf]
        %v1484 = vld [vmem:[%s555 + $0x18] sm:$0xf]
        %v1485 = vld [vmem:[%s555 + $0x1c] sm:$0xf]
        %v1486 = vld [vmem:[%s555 + $0x20] sm:$0xf]
        %v1487 = vld [vmem:[%s555 + $0x24] sm:$0xf]
        %v1488 = vld [vmem:[%s555 + $0x28] sm:$0xf]
        %v1489 = vld [vmem:[%s555 + $0x2c] sm:$0xf]
        %v1490 = vld [vmem:[%s555 + $0x30] sm:$0xf]
        %v1491 = vld [vmem:[%s555 + $0x34] sm:$0xf]
        %v1492 = vld [vmem:[%s555 + $0x38] sm:$0xf]
        %v1493 = vld [vmem:[%s555 + $0x3c] sm:$0xf]
        %v1494 = vlaneseq
        %v1495 = vshrl.u32 %v1494, 7
        %v1496 = vsub.s32 5, %v1495
        %v1497 = vrot.slane %v655, %v1496
        %v1514 = vunpack.c.l.b16 %v1478
        %v1515 = vunpack.c.l.b16 %v1479
        %v1516 = vunpack.c.l.b16 %v1480
        %v1517 = vunpack.c.l.b16 %v1481
        %v1518 = vunpack.c.l.b16 %v1482
        %v1519 = vunpack.c.l.b16 %v1483
        %v1520 = vunpack.c.l.b16 %v1484
        %v1521 = vunpack.c.l.b16 %v1485
        %v1522 = vunpack.c.l.b16 %v1486
        %v1523 = vunpack.c.l.b16 %v1487
        %v1524 = vunpack.c.l.b16 %v1488
        %v1525 = vunpack.c.l.b16 %v1489
        %v1526 = vunpack.c.l.b16 %v1490
        %v1527 = vunpack.c.l.b16 %v1491
        %v1528 = vunpack.c.l.b16 %v1492
        %v1529 = vunpack.c.l.b16 %v1493
        %v1530 = vpack.c.b16 %v1515, %v1514
        %v1531 = vpack.c.b16 %v1517, %v1516
        %v1532 = vpack.c.b16 %v1519, %v1518
        %v1533 = vpack.c.b16 %v1521, %v1520
        %v1534 = vpack.c.b16 %v1523, %v1522
        %v1535 = vpack.c.b16 %v1525, %v1524
        %v1536 = vpack.c.b16 %v1527, %v1526
        %v1537 = vpack.c.b16 %v1529, %v1528
        %1546 = vmatprep.subr.bf16.mxu0 0
        %1547 = vmatpush1.bf16.msra.mxu0 %v1530
        %1548 = vmatprep.subr.bf16.mxu0 0
        %1549 = vmatpush1.bf16.msra.mxu0 %v1531
        %1550 = vmatprep.subr.bf16.mxu0 0
        %1551 = vmatpush1.bf16.msra.mxu0 %v1532
        %1552 = vmatprep.subr.bf16.mxu0 0
        %1553 = vmatpush1.bf16.msra.mxu0 %v1533
        %1554 = vmatprep.subr.bf16.mxu0 0
        %1555 = vmatpush1.bf16.msra.mxu0 %v1534
        %1556 = vmatprep.subr.bf16.mxu0 0
        %1557 = vmatpush1.bf16.msra.mxu0 %v1535
        %1558 = vmatprep.subr.bf16.mxu0 0
        %1559 = vmatpush1.bf16.msra.mxu0 %v1536
        %1560 = vmatprep.subr.bf16.mxu0 0
        %1561 = vmatpush1.bf16.msra.mxu0 %v1537
        %1562 = vmatprep.subr.bf16.mxu0 0
        %1563 = vmatpush1.bf16.msra.mxu0 0
        %1564 = vmatprep.subr.bf16.mxu0 0
        %1565 = vmatpush1.bf16.msra.mxu0 0
        %1566 = vmatprep.subr.bf16.mxu0 0
        %1567 = vmatpush1.bf16.msra.mxu0 0
        %1568 = vmatprep.subr.bf16.mxu0 0
        %1569 = vmatpush1.bf16.msra.mxu0 0
        %1570 = vmatprep.subr.bf16.mxu0 0
        %1571 = vmatpush1.bf16.msra.mxu0 0
        %1572 = vmatprep.subr.bf16.mxu0 0
        %1573 = vmatpush1.bf16.msra.mxu0 0
        %1574 = vmatprep.subr.bf16.mxu0 0
        %1575 = vmatpush1.bf16.msra.mxu0 0
        %1576 = vmatprep.subr.bf16.mxu0 0
        %1577 = vmatpush1.bf16.msra.mxu0 0
        %1578 = vmatprep.mubr.bf16.mxu0 0
        %1579 = vmatmul.mubr.bf16.gmra.mrb[0].mxu0 %v1477
        %v1580 = vpop.f32.mrb[0].mxu0
        %v1581 = vadd.f32 %v1497, %v1580
        %v1582 = vpop.f32.mrb[0].mxu0
        %v1583 = vpop.f32.mrb[0].mxu0
        %v1584 = vadd.f32 %v1497, %v1583
        %v1585 = vpop.f32.mrb[0].mxu0
        %1586 = vdwg.mxu0
        %v1587 = vadd.f32 %v1310, %v1581
        %v1588 = vadd.f32 %v1311, %v1584
        %1589 = vst [vmem:[#allocation2] sm:$0xff] %v1587
        %1590 = vst [vmem:[#allocation2 + $0x8] sm:$0xff] %v1588
        %p1591 = scmp.eq.s32.totalorder %s44, 1
        // Predicated region
        $region89: #{tpu_custom_call.1} parent=59 // pred_check
          %p1592 = pneg %p1591
        $region90: #{tpu_custom_call.1} parent=59 // pred_check_branch
          %1594 = sbr.rel (%p1592) target = $region92
        $region91: #{tpu_custom_call.1} parent=59 // pred_region
          %v1595 = vld [vmem:[%s8] sm:$0xff]
          %vm1596 = vcmask 1041408
          %v1597 = vsel %vm1596, %v1588, 0.0
          %1598 = vadd.xlane.f32.xlu0 %v1597
          %v1599 = vpop.xlane.xlu0 %1598
          %v1600 = vmul.f32 %v1599, %v660
          %v1601 = vsub.f32 %v1588, %v1600
          %v1602 = vmul.f32 %v1601, %v1601
          %v1603 = vsel %vm1596, %v1602, 0.0
          %1604 = vadd.xlane.f32.xlu0 %v1603
          %v1605 = vpop.xlane.xlu0 %1604
          %v1606 = vmul.f32 %v1605, %v660
          %v1607 = vadd.f32 %v1606, 1e-05
          %v1608 = vrsqrt.pop %v1607
          %v1609 = vmul.f32 %v1601, %v1608
          %v1610 = vlaneseq
          %v1611 = vshrl.u32 %v1610, 7
          %v1612 = vsub.s32 0, %v1611
          %v1613 = vrot.slane %v1595, %v1612
          %v1614 = vmul.f32 %v1609, %v1613
          %v1615 = vlaneseq
          %v1616 = vshrl.u32 %v1615, 7
          %v1617 = vsub.s32 1, %v1616
          %v1618 = vrot.slane %v1595, %v1617
          %v1619 = vadd.f32 %v1614, %v1618
          %v1620 = vsel %vm1596, %v1619, 0.0
          %1621 = vadd.xlane.f32.xlu0 %v1620
          %v1622 = vpop.xlane.xlu0 %1621
          %v1623 = vmul.f32 %v1622, %v660
          %v1624 = vsub.f32 %v1619, %v1623
          %v1625 = vmul.f32 %v1624, %v1624
          %v1626 = vsel %vm1596, %v1625, 0.0
          %1627 = vadd.xlane.f32.xlu0 %v1626
          %v1628 = vpop.xlane.xlu0 %1627
          %v1629 = vmul.f32 %v1628, %v660
          %v1630 = vadd.f32 %v1629, 1e-05
          %v1631 = vrsqrt.pop %v1630
          %v1632 = vmul.f32 %v1624, %v1631
          %v1633 = vlaneseq
          %v1634 = vshrl.u32 %v1633, 7
          %v1635 = vsub.s32 2, %v1634
          %v1636 = vrot.slane %v1595, %v1635
          %v1637 = vmul.f32 %v1632, %v1636
          %v1638 = vlaneseq
          %v1639 = vshrl.u32 %v1638, 7
          %v1640 = vsub.s32 3, %v1639
          %v1641 = vrot.slane %v1595, %v1640
          %v1642 = vadd.f32 %v1637, %v1641
          %v1643 = vld [vmem:[#allocation12] sm:$0xff]
          %v1644 = vld [vmem:[#allocation12 + $0x8] sm:$0xff]
          %v1645 = vld [vmem:[#allocation12 + $0x10] sm:$0xff]
          %v1646 = vld [vmem:[#allocation12 + $0x18] sm:$0xff]
          %v1647 = vld [vmem:[#allocation12 + $0x20] sm:$0xff]
          %v1648 = vld [vmem:[#allocation12 + $0x28] sm:$0xff]
          %v1649 = vld [vmem:[#allocation12 + $0x30] sm:$0xff]
          %v1650 = vld [vmem:[#allocation12 + $0x38] sm:$0xff]
          %v1651 = vld [vmem:[#allocation12 + $0x40] sm:$0xff]
          %v1652 = vld [vmem:[#allocation12 + $0x48] sm:$0xff]
          %v1653 = vld [vmem:[#allocation12 + $0x50] sm:$0xff]
          %v1654 = vld [vmem:[#allocation12 + $0x58] sm:$0xff]
          %v1655 = vld [vmem:[#allocation12 + $0x60] sm:$0xff]
          %v1656 = vld [vmem:[#allocation12 + $0x68] sm:$0xff]
          %v1657 = vld [vmem:[#allocation12 + $0x70] sm:$0xff]
          %v1658 = vld [vmem:[#allocation12 + $0x78] sm:$0xff]
          %v1659 = vlaneseq
          %v1660 = vshrl.u32 %v1659, 7
          %v1661 = vsub.s32 4, %v1660
          %v1662 = vrot.slane %v1595, %v1661
          %1663 = vmatprep.subr.mxu0 0.0
          %1664 = vmatpush1.msra.mxu0 %v1643
          %1665 = vmatprep.subr.mxu0 0.0
          %1666 = vmatpush1.msra.mxu0 %v1644
          %1667 = vmatprep.subr.mxu0 0.0
          %1668 = vmatpush1.msra.mxu0 %v1645
          %1669 = vmatprep.subr.mxu0 0.0
          %1670 = vmatpush1.msra.mxu0 %v1646
          %1671 = vmatprep.subr.mxu0 0.0
          %1672 = vmatpush1.msra.mxu0 %v1647
          %1673 = vmatprep.subr.mxu0 0.0
          %1674 = vmatpush1.msra.mxu0 %v1648
          %1675 = vmatprep.subr.mxu0 0.0
          %1676 = vmatpush1.msra.mxu0 %v1649
          %1677 = vmatprep.subr.mxu0 0.0
          %1678 = vmatpush1.msra.mxu0 %v1650
          %1679 = vmatprep.subr.mxu0 0.0
          %1680 = vmatpush1.msra.mxu0 %v1651
          %1681 = vmatprep.subr.mxu0 0.0
          %1682 = vmatpush1.msra.mxu0 %v1652
          %1683 = vmatprep.subr.mxu0 0.0
          %1684 = vmatpush1.msra.mxu0 %v1653
          %1685 = vmatprep.subr.mxu0 0.0
          %1686 = vmatpush1.msra.mxu0 %v1654
          %1687 = vmatprep.subr.mxu0 0.0
          %1688 = vmatpush1.msra.mxu0 %v1655
          %1689 = vmatprep.subr.mxu0 0.0
          %1690 = vmatpush1.msra.mxu0 %v1656
          %1691 = vmatprep.subr.mxu0 0.0
          %1692 = vmatpush1.msra.mxu0 %v1657
          %1693 = vmatprep.subr.mxu0 0.0
          %1694 = vmatpush1.msra.mxu0 %v1658
          %1695 = vmatprep.subr.mxu0 0.0
          %1696 = vmatpush1.msra.mxu0 0.0
          %1697 = vmatprep.subr.mxu0 0.0
          %1698 = vmatpush1.msra.mxu0 0.0
          %1699 = vmatprep.subr.mxu0 0.0
          %1700 = vmatpush1.msra.mxu0 0.0
          %1701 = vmatprep.subr.mxu0 0.0
          %1702 = vmatpush1.msra.mxu0 0.0
          %1703 = vmatprep.subr.mxu0 0.0
          %1704 = vmatpush1.msra.mxu0 0.0
          %1705 = vmatprep.subr.mxu0 0.0
          %1706 = vmatpush1.msra.mxu0 0.0
          %1707 = vmatprep.subr.mxu0 0.0
          %1708 = vmatpush1.msra.mxu0 0.0
          %1709 = vmatprep.subr.mxu0 0.0
          %1710 = vmatpush1.msra.mxu0 0.0
          %1711 = vmatprep.subr.mxu0 0.0
          %1712 = vmatpush1.msra.mxu0 0.0
          %1713 = vmatprep.subr.mxu0 0.0
          %1714 = vmatpush1.msra.mxu0 0.0
          %1715 = vmatprep.subr.mxu0 0.0
          %1716 = vmatpush1.msra.mxu0 0.0
          %1717 = vmatprep.subr.mxu0 0.0
          %1718 = vmatpush1.msra.mxu0 0.0
          %1719 = vmatprep.subr.mxu0 0.0
          %1720 = vmatpush1.msra.mxu0 0.0
          %1721 = vmatprep.subr.mxu0 0.0
          %1722 = vmatpush1.msra.mxu0 0.0
          %1723 = vmatprep.subr.mxu0 0.0
          %1724 = vmatpush1.msra.mxu0 0.0
          %1725 = vmatprep.subr.mxu0 0.0
          %1726 = vmatpush1.msra.mxu0 0.0
          %1727 = vmatprep.mubr.f32.mxu0 0.0
          %1728 = vmatmul.mubr.f32.gmra.mrb[0].mxu0 %v1642
          %v1729 = vpop.f32.mrb[0].mxu0
          %v1730 = vadd.f32 %v1662, %v1729
          %v1731 = vpop.f32.mrb[0].mxu0
          %1732 = vdwg.mxu0
          %1733 = vst [vmem:[%s626] sm:$0x3] %v1730
          %v1734 = vmul.f32 %v1730, %v1730
          %v1735 = vsel %vm1596, %v1734, 0.0
          %1736 = vadd.xlane.f32.xlu0 %v1735
          %v1737 = vpop.xlane.xlu0 %1736
          %v1738 = vmax.f32 %v1737, 1e-24
          %v1739 = vrsqrt.pop %v1738
          %v1740 = vmul.f32 %v1730, %v1739
          %v1742 = vrot.slane %v1740, 1
          %v1744 = vsub.f32 %v1740, %v1742
          %v1745 = vpack.c.bf16 %v1744, %v1744
          %v1746 = vld [vmem:[%s636] sm:$0xf]
          %1747 = vmatprep.subr.bf16.mxu0 0
          %1748 = vmatpush1.bf16.xpose.msra.mxu0 %v1746
          %1749 = vmatprep.subr.bf16.mxu0 0
          %1750 = vmatpush1.bf16.xpose.msra.mxu0 0
          %1751 = vmatprep.subr.bf16.mxu0 0
          %1752 = vmatpush1.bf16.xpose.msra.mxu0 0
          %1753 = vmatprep.subr.bf16.mxu0 0
          %1754 = vmatpush1.bf16.xpose.msra.mxu0 0
          %1755 = vmatprep.subr.bf16.mxu0 0
          %1756 = vmatpush1.bf16.xpose.msra.mxu0 0
          %1757 = vmatprep.subr.bf16.mxu0 0
          %1758 = vmatpush1.bf16.xpose.msra.mxu0 0
          %1759 = vmatprep.subr.bf16.mxu0 0
          %1760 = vmatpush1.bf16.xpose.msra.mxu0 0
          %1761 = vmatprep.subr.bf16.mxu0 0
          %1762 = vmatpush1.bf16.xpose.msra.mxu0 0
          %1763 = vmatprep.subr.bf16.mxu0 0
          %1764 = vmatpush1.bf16.xpose.msra.mxu0 0
          %1765 = vmatprep.subr.bf16.mxu0 0
          %1766 = vmatpush1.bf16.xpose.msra.mxu0 0
          %1767 = vmatprep.subr.bf16.mxu0 0
          %1768 = vmatpush1.bf16.xpose.msra.mxu0 0
          %1769 = vmatprep.subr.bf16.mxu0 0
          %1770 = vmatpush1.bf16.xpose.msra.mxu0 0
          %1771 = vmatprep.subr.bf16.mxu0 0
          %1772 = vmatpush1.bf16.xpose.msra.mxu0 0
          %1773 = vmatprep.subr.bf16.mxu0 0
          %1774 = vmatpush1.bf16.xpose.msra.mxu0 0
          %1775 = vmatprep.subr.bf16.mxu0 0
          %1776 = vmatpush1.bf16.xpose.msra.mxu0 0
          %1777 = vmatprep.subr.bf16.mxu0 0
          %1778 = vmatpush1.bf16.xpose.msra.mxu0 0
          %1779 = vmatprep.mubr.bf16.mxu0 0
          %1780 = vmatmul.mubr.bf16.gmra.mrb[0].mxu0 %v1745
          %v1781 = vpop.f32.mrb[0].mxu0
          %v1782 = vadd.f32 0.0, %v1781
          %v1783 = vpop.f32.mrb[0].mxu0
          %v1784 = vpop.f32.mrb[0].mxu0
          %v1785 = vpop.f32.mrb[0].mxu0
          %1786 = vdwg.mxu0
          %vm1787 = vcmask 57344
          %1788 = vst.msk [vmem:[%s632] sm:$0x1] %vm1787, %v1782
        $region92: #{tpu_custom_call.1} parent=59 // pred_fallthru
          _
        %s1789 = sand.u32 %s309, 1
        %s1790 = scalar_lea.sflag [#allocation5], %s1789
        %s1791 = sand.u32 %s309, 1
        %s1792 = smul.addr %s1791, 2
        %s1793 = scalar_lea.vmem [#allocation14], %s1792
        %s1794 = sand.u32 %s335, 1
        %s1795 = scalar_lea.sflag [#allocation16], %s1794
        %s1796 = sand.u32 %s335, 1
        %s1797 = scalar_lea.vmem [#allocation15], %s1796
        // Predicated region
        $region93: #{tpu_custom_call.1} parent=59 // pred_check
          %p1798 = pneg %p319
        $region94: #{tpu_custom_call.1} parent=59 // pred_check_branch
          %1800 = sbr.rel (%p1798) target = $region96
        $region95: #{tpu_custom_call.1} parent=59 // pred_region
          %s1802 = ssub.s32 32, 32
          %1803 = vsyncadd %s1790, %s1802
          %s1804 = smul.addr %s43, 32
          %s1805 = scalar_lea.hbm %s10, %s1804
          %s1807 = sshll.u32 %s1793, 4
          %s1808 = int_to_ptr.vmem [resolvable:$true] %s1807
          %1810 = dma.vmem_to_hbm [thread:$0]  %s1808, 32, %s1805, %s1790
        $region96: #{tpu_custom_call.1} parent=59 // pred_fallthru
          _
        // Predicated region
        $region97: #{tpu_custom_call.1} parent=59 // pred_check
          %p1811 = pneg %p345
        $region98: #{tpu_custom_call.1} parent=59 // pred_check_branch
          %1813 = sbr.rel (%p1811) target = $region100
        $region99: #{tpu_custom_call.1} parent=59 // pred_region
          %s1815 = ssub.s32 16, 16
          %1816 = vsyncadd %s1795, %s1815
          %s1817 = smul.addr %s43, 16
          %s1818 = scalar_lea.hbm %s11, %s1817
          %s1820 = sshll.u32 %s1797, 4
          %s1821 = int_to_ptr.vmem [resolvable:$true] %s1820
          %1823 = dma.vmem_to_hbm [thread:$0]  %s1821, 16, %s1818, %s1795
        $region100: #{tpu_custom_call.1} parent=59 // pred_fallthru
          _
      $region60: #{tpu_custom_call.1} parent=5 // pred_fallthru
        _
      %p1824 = scmp.le.s32.totalorder 2, %s34
      // Predicated region
      $region101: #{tpu_custom_call.1} parent=5 // pred_check
        %p1825 = pneg %p1824
      $region102: #{tpu_custom_call.1} parent=5 // pred_check_branch
        %1827 = sbr.rel (%p1825) target = $region104
      $region103: #{tpu_custom_call.1} parent=5 // pred_region
        %s1828 = ssub.s32 %s34, 2
        // Predicated region
        $region105: #{tpu_custom_call.1} parent=103 // pred_check
          %p1829 = pneg %p325
        $region106: #{tpu_custom_call.1} parent=103 // pred_check_branch
          %1831 = sbr.rel (%p1829) target = $region108
        $region107: #{tpu_custom_call.1} parent=103 // pred_region
          %s1832 = sand.u32 %s310, 1
          %s1833 = scalar_lea.sflag [#allocation5], %s1832
          %s1834 = sand.u32 %s310, 1
          %s1835 = smul.addr %s1834, 2
          %s1836 = scalar_lea.vmem [#allocation14], %s1835
          %1837 = dma.done %s1833, 32
        $region108: #{tpu_custom_call.1} parent=103 // pred_fallthru
          _
        // Predicated region
        $region109: #{tpu_custom_call.1} parent=103 // pred_check
          %p1838 = pneg %p351
        $region110: #{tpu_custom_call.1} parent=103 // pred_check_branch
          %1840 = sbr.rel (%p1838) target = $region112
        $region111: #{tpu_custom_call.1} parent=103 // pred_region
          %s1841 = sand.u32 %s336, 1
          %s1842 = scalar_lea.sflag [#allocation16], %s1841
          %s1843 = sand.u32 %s336, 1
          %s1844 = scalar_lea.vmem [#allocation15], %s1843
          %1845 = dma.done %s1842, 16
        $region112: #{tpu_custom_call.1} parent=103 // pred_fallthru
          _
      $region104: #{tpu_custom_call.1} parent=5 // pred_fallthru
        _
    $region6: #{tpu_custom_call.1} parent=1 // loop_footer
      %s38 = sadd.s32 1, %s34
    $region7: #{tpu_custom_call.1} parent=1 // loop_footer_branch
      %33 = sbr.rel target = $region3
    $region8: #{tpu_custom_call.1} parent=1 // loop_exit
      _
    %1846 = vsyncpa [#allocation4], 1
    %s1847 = scalar_lea.sflag [#allocation4], 1
    %1848 = vsyncpa %s1847, 1
    %1849 = vsyncpa [#allocation7], 1
    %s1850 = scalar_lea.sflag [#allocation7], 1
    %1851 = vsyncpa %s1850, 1
    %1852 = vsyncpa [#allocation10], 1
    %s1853 = scalar_lea.sflag [#allocation10], 1
    %1854 = vsyncpa %s1853, 1
    %1855 = vsyncpa [#allocation13], 1
    %1856 = vsyncpa [#allocation5], 1
    %s1857 = scalar_lea.sflag [#allocation5], 1
    %1858 = vsyncpa %s1857, 1
    %1859 = vsyncpa [#allocation16], 1
    %s1860 = scalar_lea.sflag [#allocation16], 1
    %1861 = vsyncpa %s1860, 1

</llo_original>
